<compile_context>
chip_gen: v7x
topology: tpu7x:2x2x1
jax: 0.10.0
libtpu: 0.0.40
codegen_flags: <defaults>
</compile_context>

<pallas_src>
import functools
import math

import jax
import jax.numpy as jnp
from jax.experimental import pallas as pl
from jax.experimental.pallas import tpu as pltpu

EPS = 1e-5
NEG_SLOPE = 0.2

K_PAD = 128       # layer-1 contraction dim padded 101 (100 inputs + bias col) -> 128
OUT_PAD = 896     # output feature dim padded 784 -> 896 (7 * 128) for lane-dense stores
OUT_TRUE = 784
SUBLANE = 16      # bf16 sublane packing: pad batch to a multiple of 16


def generator_kernel(
    x_ref, mask_ref,
    w1_ref, g1_ref, be1_ref,
    w2_ref, b2_ref, g2_ref, be2_ref,
    w3_ref, b3_ref, g3_ref, be3_ref,
    w4_ref, b4_ref,
    out_ref,
    *, inv_n, use_mask,
):
    mask = mask_ref[...] if use_mask else None

    def lrelu_bn(h, g_ref, be_ref):
        # LeakyReLU(0.2): max(h, 0.2*h) — valid for 0 < slope < 1.
        h = jnp.maximum(h, NEG_SLOPE * h)
        if mask is not None:
            # Zero padded batch rows so batch statistics below stay exact.
            h = h * mask
        # BatchNorm (training mode, biased variance), one-pass statistics
        # folded into a per-feature scale/shift. inv_n = 1 / true_batch.
        mean = jnp.sum(h, axis=0, keepdims=True) * inv_n
        mean_sq = jnp.sum(h * h, axis=0, keepdims=True) * inv_n
        var = jnp.maximum(mean_sq - mean * mean, 0.0)  # guard cancellation
        scale = g_ref[...] * jax.lax.rsqrt(var + EPS)
        shift = be_ref[...] - mean * scale
        h = h * scale + shift
        return h.astype(jnp.bfloat16)  # next MXU dot consumes bf16

    # Layer 1: fc1 bias is folded into w1 row 100 (x carries a ones column).
    h = jnp.dot(x_ref[...], w1_ref[...], preferred_element_type=jnp.float32)
    h = lrelu_bn(h, g1_ref, be1_ref)

    h = jnp.dot(h, w2_ref[...], preferred_element_type=jnp.float32) + b2_ref[...]
    h = lrelu_bn(h, g2_ref, be2_ref)

    h = jnp.dot(h, w3_ref[...], preferred_element_type=jnp.float32) + b3_ref[...]
    h = lrelu_bn(h, g3_ref, be3_ref)

    # Layer 4 (no activation / no batchnorm). N already lane-padded to 896.
    out = jnp.dot(h, w4_ref[...], preferred_element_type=jnp.float32) + b4_ref[...]
    out_ref[...] = out.astype(out_ref.dtype)


def generator_forward(x, params):
    """x: [B, 100] float32. Returns [B, 28, 28] float32."""
    B, k_in = x.shape
    assert k_in == 100, k_in
    B_pad = ((B + SUBLANE - 1) // SUBLANE) * SUBLANE

    # Append the ones column that picks up the folded fc1 bias, pad contraction
    # dim 101 -> 128 and batch dim to a multiple of 16. Padded rows are all-zero.
    ones = jnp.ones((B, 1), x.dtype)
    x_aug = jnp.concatenate([x, ones], axis=1)                       # (B, 101)
    x_p = jnp.pad(x_aug, ((0, B_pad - B), (0, K_PAD - (k_in + 1))))
    x_p = x_p.astype(jnp.bfloat16)

    # Row mask: 1 for real rows, 0 for padded rows (keeps BN stats exact).
    mask = (jnp.arange(B_pad, dtype=jnp.int32)[:, None] < B).astype(jnp.float32)

    args = (x_p, mask) + tuple(params)

    def full(arr):
        return pl.BlockSpec(arr.shape, lambda: (0,) * arr.ndim)

    # Single-block design: all weights (~0.7 MiB bf16) + activations stay resident
    # in VMEM. Size the scoped-VMEM request from the actual footprint.
    weight_bytes = sum(int(p.size) * p.dtype.itemsize for p in params)
    per_row_bytes = 24 * 1024  # generous: f32 intermediates + bf16 copies + output
    vmem_bytes = weight_bytes + B_pad * per_row_bytes + (4 << 20)
    vmem_bytes = max(16 << 20, min(vmem_bytes, 48 << 20))

    kernel = functools.partial(
        generator_kernel, inv_n=1.0 / B, use_mask=(B_pad != B))

    out = pl.pallas_call(
        kernel,
        out_shape=jax.ShapeDtypeStruct((B_pad, OUT_PAD), jnp.float32),
        grid=(),
        in_specs=[full(a) for a in args],
        out_specs=pl.BlockSpec((B_pad, OUT_PAD), lambda: (0, 0)),
        compiler_params=pltpu.CompilerParams(vmem_limit_bytes=vmem_bytes),
    )(*args)

    # Drop batch/lane padding, reshape to image (kept out of the kernel so the
    # kernel's stores stay lane-dense).
    return out[:B, :OUT_TRUE].reshape(B, 28, 28)


def init_params(key):
    """PyTorch nn.Linear-style init (uniform ±1/sqrt(fan_in)).

    Weights are stored as [in_features, out_features] bf16 (kernel does x @ W):
      - w1: (128, 512): rows 0..99 = fc1 weight, row 100 = fc1 bias (folded),
        rows 101..127 = 0.
      - w4 / b4: output dim zero-padded 784 -> 896.
    fc2/fc3/fc4 biases and BatchNorm gamma/beta stay f32 (added to the f32
    accumulator / used in f32 BN math)."""
    dims = [(100, 512), (512, 256), (256, 128), (128, OUT_TRUE)]
    keys = jax.random.split(key, 2 * len(dims))
    params = []
    for i, (fin, fout) in enumerate(dims):
        bound = 1.0 / math.sqrt(fin)
        w = jax.random.uniform(keys[2 * i], (fin, fout), jnp.float32, -bound, bound)
        b = jax.random.uniform(keys[2 * i + 1], (1, fout), jnp.float32, -bound, bound)
        if i == 0:
            # fold bias into row 100, zero-pad contraction 101 -> 128
            w = jnp.concatenate(
                [w, b, jnp.zeros((K_PAD - fin - 1, fout), jnp.float32)], axis=0)
            params.append(w.astype(jnp.bfloat16))
        elif i == 3:
            # pad output dim 784 -> 896 with zero columns
            w = jnp.pad(w, ((0, 0), (0, OUT_PAD - fout)))
            b = jnp.pad(b, ((0, 0), (0, OUT_PAD - fout)))
            params.append(w.astype(jnp.bfloat16))
            params.append(b)
        else:
            params.append(w.astype(jnp.bfloat16))
            params.append(b)
        if i < 3:  # batchnorm after first 3 layers
            params.append(jnp.ones((1, fout), jnp.float32))   # gamma
            params.append(jnp.zeros((1, fout), jnp.float32))  # beta
    return tuple(params)


def reference_forward(x, params):
    """Pure-JAX f32 reference (uses the same bf16-quantized weights)."""
    (w1, g1, be1, w2, b2, g2, be2, w3, b3, g3, be3, w4, b4) = params

    def lrelu_bn(h, g, be):
        h = jnp.where(h > 0, h, NEG_SLOPE * h)
        mean = jnp.mean(h, axis=0, keepdims=True)
        var = jnp.mean((h - mean) ** 2, axis=0, keepdims=True)
        return (h - mean) / jnp.sqrt(var + EPS) * g + be

    w1f = w1.astype(jnp.float32)
    h = x @ w1f[:100] + w1f[100:101]
    h = lrelu_bn(h, g1, be1)
    h = h @ w2.astype(jnp.float32) + b2
    h = lrelu_bn(h, g2, be2)
    h = h @ w3.astype(jnp.float32) + b3
    h = lrelu_bn(h, g3, be3)
    h = h @ w4.astype(jnp.float32) + b4
    return h[:, :OUT_TRUE].reshape(x.shape[0], 28, 28)


if __name__ == "__main__":
    key = jax.random.PRNGKey(0)
    k_params, k_x = jax.random.split(key)
    params = init_params(k_params)

    B = 8  # small test batch; the wrapper supports (and is intended for) large B
    x = jax.random.normal(k_x, (B, 100), dtype=jnp.float32)

    out = generator_forward(x, params)
    jax.block_until_ready(out)
    assert out.shape == (B, 28, 28), out.shape
    assert bool(jnp.all(jnp.isfinite(out))), "non-finite values in output"

    ref = reference_forward(x, params)
    max_err = float(jnp.max(jnp.abs(out - ref)))
    assert max_err < 0.2, f"mismatch vs f32 reference: max abs err {max_err}"

    print("KERNEL_OK")
</pallas_src>

<mosaic_0001>
module attributes {stable_mosaic.version = 11 : i64} {
  func.func @generator_kernel(%arg0: memref<16x128xbf16, #tpu.memory_space<vmem>>, %arg1: memref<16x1xf32, #tpu.memory_space<vmem>>, %arg2: memref<128x512xbf16, #tpu.memory_space<vmem>>, %arg3: memref<1x512xf32, #tpu.memory_space<vmem>>, %arg4: memref<1x512xf32, #tpu.memory_space<vmem>>, %arg5: memref<512x256xbf16, #tpu.memory_space<vmem>>, %arg6: memref<1x256xf32, #tpu.memory_space<vmem>>, %arg7: memref<1x256xf32, #tpu.memory_space<vmem>>, %arg8: memref<1x256xf32, #tpu.memory_space<vmem>>, %arg9: memref<256x128xbf16, #tpu.memory_space<vmem>>, %arg10: memref<1x128xf32, #tpu.memory_space<vmem>>, %arg11: memref<1x128xf32, #tpu.memory_space<vmem>>, %arg12: memref<1x128xf32, #tpu.memory_space<vmem>>, %arg13: memref<128x896xbf16, #tpu.memory_space<vmem>>, %arg14: memref<1x896xf32, #tpu.memory_space<vmem>>, %arg15: memref<16x896xf32, #tpu.memory_space<vmem>>) attributes {dimension_semantics = [], scalar_prefetch = 0 : i64, scratch_operands = 0 : i64, tpu.core_type = #tpu.core_type<tc>} {
    %c0 = arith.constant 0 : index
    %c0_0 = arith.constant 0 : index
    %0 = vector.load %arg1[%c0, %c0_0] : memref<16x1xf32, #tpu.memory_space<vmem>>, vector<16x1xf32>
    %c0_1 = arith.constant 0 : index
    %c0_2 = arith.constant 0 : index
    %1 = vector.load %arg0[%c0_1, %c0_2] : memref<16x128xbf16, #tpu.memory_space<vmem>>, vector<16x128xbf16>
    %c0_3 = arith.constant 0 : index
    %c0_4 = arith.constant 0 : index
    %2 = vector.load %arg2[%c0_3, %c0_4] : memref<128x512xbf16, #tpu.memory_space<vmem>>, vector<128x512xbf16>
    %cst = arith.constant dense<0.000000e+00> : vector<16x512xf32>
    %3 = tpu.matmul %1, %2, %cst {dimension_numbers = #tpu.dot_dimension_numbers<[1], [0], [0], [1], [0, 0, 1, 1], [], []>} : vector<16x128xbf16>, vector<128x512xbf16>, vector<16x512xf32> -> vector<16x512xf32>
    %cst_5 = arith.constant 2.000000e-01 : f32
    %4 = vector.broadcast %cst_5 : f32 to vector<16x512xf32>
    %5 = arith.mulf %4, %3 : vector<16x512xf32>
    %6 = arith.maximumf %3, %5 : vector<16x512xf32>
    %7 = vector.broadcast %0 : vector<16x1xf32> to vector<16x512xf32>
    %8 = arith.mulf %6, %7 : vector<16x512xf32>
    %cst_6 = arith.constant dense<0.000000e+00> : vector<512xf32>
    %9 = vector.multi_reduction <add>, %8, %cst_6 [0] : vector<16x512xf32> to vector<512xf32>
    %10 = vector.shape_cast %9 : vector<512xf32> to vector<1x512xf32>
    %cst_7 = arith.constant 1.250000e-01 : f32
    %11 = vector.broadcast %cst_7 : f32 to vector<1x512xf32>
    %12 = arith.mulf %10, %11 : vector<1x512xf32>
    %13 = arith.mulf %8, %8 : vector<16x512xf32>
    %cst_8 = arith.constant dense<0.000000e+00> : vector<512xf32>
    %14 = vector.multi_reduction <add>, %13, %cst_8 [0] : vector<16x512xf32> to vector<512xf32>
    %15 = vector.shape_cast %14 : vector<512xf32> to vector<1x512xf32>
    %cst_9 = arith.constant 1.250000e-01 : f32
    %16 = vector.broadcast %cst_9 : f32 to vector<1x512xf32>
    %17 = arith.mulf %15, %16 : vector<1x512xf32>
    %18 = arith.mulf %12, %12 : vector<1x512xf32>
    %19 = arith.subf %17, %18 : vector<1x512xf32>
    %cst_10 = arith.constant 0.000000e+00 : f32
    %20 = vector.broadcast %cst_10 : f32 to vector<1x512xf32>
    %21 = arith.maximumf %19, %20 : vector<1x512xf32>
    %c0_11 = arith.constant 0 : index
    %c0_12 = arith.constant 0 : index
    %22 = vector.load %arg3[%c0_11, %c0_12] : memref<1x512xf32, #tpu.memory_space<vmem>>, vector<1x512xf32>
    %cst_13 = arith.constant 9.99999974E-6 : f32
    %23 = vector.broadcast %cst_13 : f32 to vector<1x512xf32>
    %24 = arith.addf %21, %23 : vector<1x512xf32>
    %25 = math.rsqrt %24 : vector<1x512xf32>
    %26 = arith.mulf %22, %25 : vector<1x512xf32>
    %c0_14 = arith.constant 0 : index
    %c0_15 = arith.constant 0 : index
    %27 = vector.load %arg4[%c0_14, %c0_15] : memref<1x512xf32, #tpu.memory_space<vmem>>, vector<1x512xf32>
    %28 = arith.mulf %12, %26 : vector<1x512xf32>
    %29 = arith.subf %27, %28 : vector<1x512xf32>
    %30 = vector.broadcast %26 : vector<1x512xf32> to vector<16x512xf32>
    %31 = arith.mulf %8, %30 : vector<16x512xf32>
    %32 = vector.broadcast %29 : vector<1x512xf32> to vector<16x512xf32>
    %33 = arith.addf %31, %32 : vector<16x512xf32>
    %34 = arith.truncf %33 : vector<16x512xf32> to vector<16x512xbf16>
    %c0_16 = arith.constant 0 : index
    %c0_17 = arith.constant 0 : index
    %35 = vector.load %arg5[%c0_16, %c0_17] : memref<512x256xbf16, #tpu.memory_space<vmem>>, vector<512x256xbf16>
    %cst_18 = arith.constant dense<0.000000e+00> : vector<16x256xf32>
    %36 = tpu.matmul %34, %35, %cst_18 {dimension_numbers = #tpu.dot_dimension_numbers<[1], [0], [0], [1], [0, 0, 1, 1], [], []>} : vector<16x512xbf16>, vector<512x256xbf16>, vector<16x256xf32> -> vector<16x256xf32>
    %c0_19 = arith.constant 0 : index
    %c0_20 = arith.constant 0 : index
    %37 = vector.load %arg6[%c0_19, %c0_20] : memref<1x256xf32, #tpu.memory_space<vmem>>, vector<1x256xf32>
    %38 = vector.broadcast %37 : vector<1x256xf32> to vector<16x256xf32>
    %39 = arith.addf %36, %38 : vector<16x256xf32>
    %cst_21 = arith.constant 2.000000e-01 : f32
    %40 = vector.broadcast %cst_21 : f32 to vector<16x256xf32>
    %41 = arith.mulf %40, %39 : vector<16x256xf32>
    %42 = arith.maximumf %39, %41 : vector<16x256xf32>
    %43 = vector.broadcast %0 : vector<16x1xf32> to vector<16x256xf32>
    %44 = arith.mulf %42, %43 : vector<16x256xf32>
    %cst_22 = arith.constant dense<0.000000e+00> : vector<256xf32>
    %45 = vector.multi_reduction <add>, %44, %cst_22 [0] : vector<16x256xf32> to vector<256xf32>
    %46 = vector.shape_cast %45 : vector<256xf32> to vector<1x256xf32>
    %cst_23 = arith.constant 1.250000e-01 : f32
    %47 = vector.broadcast %cst_23 : f32 to vector<1x256xf32>
    %48 = arith.mulf %46, %47 : vector<1x256xf32>
    %49 = arith.mulf %44, %44 : vector<16x256xf32>
    %cst_24 = arith.constant dense<0.000000e+00> : vector<256xf32>
    %50 = vector.multi_reduction <add>, %49, %cst_24 [0] : vector<16x256xf32> to vector<256xf32>
    %51 = vector.shape_cast %50 : vector<256xf32> to vector<1x256xf32>
    %cst_25 = arith.constant 1.250000e-01 : f32
    %52 = vector.broadcast %cst_25 : f32 to vector<1x256xf32>
    %53 = arith.mulf %51, %52 : vector<1x256xf32>
    %54 = arith.mulf %48, %48 : vector<1x256xf32>
    %55 = arith.subf %53, %54 : vector<1x256xf32>
    %cst_26 = arith.constant 0.000000e+00 : f32
    %56 = vector.broadcast %cst_26 : f32 to vector<1x256xf32>
    %57 = arith.maximumf %55, %56 : vector<1x256xf32>
    %c0_27 = arith.constant 0 : index
    %c0_28 = arith.constant 0 : index
    %58 = vector.load %arg7[%c0_27, %c0_28] : memref<1x256xf32, #tpu.memory_space<vmem>>, vector<1x256xf32>
    %cst_29 = arith.constant 9.99999974E-6 : f32
    %59 = vector.broadcast %cst_29 : f32 to vector<1x256xf32>
    %60 = arith.addf %57, %59 : vector<1x256xf32>
    %61 = math.rsqrt %60 : vector<1x256xf32>
    %62 = arith.mulf %58, %61 : vector<1x256xf32>
    %c0_30 = arith.constant 0 : index
    %c0_31 = arith.constant 0 : index
    %63 = vector.load %arg8[%c0_30, %c0_31] : memref<1x256xf32, #tpu.memory_space<vmem>>, vector<1x256xf32>
    %64 = arith.mulf %48, %62 : vector<1x256xf32>
    %65 = arith.subf %63, %64 : vector<1x256xf32>
    %66 = vector.broadcast %62 : vector<1x256xf32> to vector<16x256xf32>
    %67 = arith.mulf %44, %66 : vector<16x256xf32>
    %68 = vector.broadcast %65 : vector<1x256xf32> to vector<16x256xf32>
    %69 = arith.addf %67, %68 : vector<16x256xf32>
    %70 = arith.truncf %69 : vector<16x256xf32> to vector<16x256xbf16>
    %c0_32 = arith.constant 0 : index
    %c0_33 = arith.constant 0 : index
    %71 = vector.load %arg9[%c0_32, %c0_33] : memref<256x128xbf16, #tpu.memory_space<vmem>>, vector<256x128xbf16>
    %cst_34 = arith.constant dense<0.000000e+00> : vector<16x128xf32>
    %72 = tpu.matmul %70, %71, %cst_34 {dimension_numbers = #tpu.dot_dimension_numbers<[1], [0], [0], [1], [0, 0, 1, 1], [], []>} : vector<16x256xbf16>, vector<256x128xbf16>, vector<16x128xf32> -> vector<16x128xf32>
    %c0_35 = arith.constant 0 : index
    %c0_36 = arith.constant 0 : index
    %73 = vector.load %arg10[%c0_35, %c0_36] : memref<1x128xf32, #tpu.memory_space<vmem>>, vector<1x128xf32>
    %74 = vector.broadcast %73 : vector<1x128xf32> to vector<16x128xf32>
    %75 = arith.addf %72, %74 : vector<16x128xf32>
    %cst_37 = arith.constant 2.000000e-01 : f32
    %76 = vector.broadcast %cst_37 : f32 to vector<16x128xf32>
    %77 = arith.mulf %76, %75 : vector<16x128xf32>
    %78 = arith.maximumf %75, %77 : vector<16x128xf32>
    %79 = vector.broadcast %0 : vector<16x1xf32> to vector<16x128xf32>
    %80 = arith.mulf %78, %79 : vector<16x128xf32>
    %cst_38 = arith.constant dense<0.000000e+00> : vector<128xf32>
    %81 = vector.multi_reduction <add>, %80, %cst_38 [0] : vector<16x128xf32> to vector<128xf32>
    %82 = vector.shape_cast %81 : vector<128xf32> to vector<1x128xf32>
    %cst_39 = arith.constant 1.250000e-01 : f32
    %83 = vector.broadcast %cst_39 : f32 to vector<1x128xf32>
    %84 = arith.mulf %82, %83 : vector<1x128xf32>
    %85 = arith.mulf %80, %80 : vector<16x128xf32>
    %cst_40 = arith.constant dense<0.000000e+00> : vector<128xf32>
    %86 = vector.multi_reduction <add>, %85, %cst_40 [0] : vector<16x128xf32> to vector<128xf32>
    %87 = vector.shape_cast %86 : vector<128xf32> to vector<1x128xf32>
    %cst_41 = arith.constant 1.250000e-01 : f32
    %88 = vector.broadcast %cst_41 : f32 to vector<1x128xf32>
    %89 = arith.mulf %87, %88 : vector<1x128xf32>
    %90 = arith.mulf %84, %84 : vector<1x128xf32>
    %91 = arith.subf %89, %90 : vector<1x128xf32>
    %cst_42 = arith.constant 0.000000e+00 : f32
    %92 = vector.broadcast %cst_42 : f32 to vector<1x128xf32>
    %93 = arith.maximumf %91, %92 : vector<1x128xf32>
    %c0_43 = arith.constant 0 : index
    %c0_44 = arith.constant 0 : index
    %94 = vector.load %arg11[%c0_43, %c0_44] : memref<1x128xf32, #tpu.memory_space<vmem>>, vector<1x128xf32>
    %cst_45 = arith.constant 9.99999974E-6 : f32
    %95 = vector.broadcast %cst_45 : f32 to vector<1x128xf32>
    %96 = arith.addf %93, %95 : vector<1x128xf32>
    %97 = math.rsqrt %96 : vector<1x128xf32>
    %98 = arith.mulf %94, %97 : vector<1x128xf32>
    %c0_46 = arith.constant 0 : index
    %c0_47 = arith.constant 0 : index
    %99 = vector.load %arg12[%c0_46, %c0_47] : memref<1x128xf32, #tpu.memory_space<vmem>>, vector<1x128xf32>
    %100 = arith.mulf %84, %98 : vector<1x128xf32>
    %101 = arith.subf %99, %100 : vector<1x128xf32>
    %102 = vector.broadcast %98 : vector<1x128xf32> to vector<16x128xf32>
    %103 = arith.mulf %80, %102 : vector<16x128xf32>
    %104 = vector.broadcast %101 : vector<1x128xf32> to vector<16x128xf32>
    %105 = arith.addf %103, %104 : vector<16x128xf32>
    %106 = arith.truncf %105 : vector<16x128xf32> to vector<16x128xbf16>
    %c0_48 = arith.constant 0 : index
    %c0_49 = arith.constant 0 : index
    %107 = vector.load %arg13[%c0_48, %c0_49] : memref<128x896xbf16, #tpu.memory_space<vmem>>, vector<128x896xbf16>
    %cst_50 = arith.constant dense<0.000000e+00> : vector<16x896xf32>
    %108 = tpu.matmul %106, %107, %cst_50 {dimension_numbers = #tpu.dot_dimension_numbers<[1], [0], [0], [1], [0, 0, 1, 1], [], []>} : vector<16x128xbf16>, vector<128x896xbf16>, vector<16x896xf32> -> vector<16x896xf32>
    %c0_51 = arith.constant 0 : index
    %c0_52 = arith.constant 0 : index
    %109 = vector.load %arg14[%c0_51, %c0_52] : memref<1x896xf32, #tpu.memory_space<vmem>>, vector<1x896xf32>
    %110 = vector.broadcast %109 : vector<1x896xf32> to vector<16x896xf32>
    %111 = arith.addf %108, %110 : vector<16x896xf32>
    %c0_53 = arith.constant 0 : index
    %c0_54 = arith.constant 0 : index
    %112 = vector.load %arg15[%c0_53, %c0_54] : memref<16x896xf32, #tpu.memory_space<vmem>>, vector<16x896xf32>
    tpu.vector_store %arg15[%c0_53, %c0_54], %111 {strides = array<i32>} : memref<16x896xf32, #tpu.memory_space<vmem>>, vector<16x896xf32>,
    return
  }
}

</mosaic_0001>

<llo_original>
// kernel: tpu_custom_call.1
$region0: #{tpu_custom_call.1}
  #allocation0 [shape = 'u32[]', space=smem, size = 0x4, offset = 0x4, fixed_abs, tag = 'smem constant byte address 0x4 - core index']
  #allocation1 [shape = 'u32[144,128]{1,0:T(1,128)}', space=vmem, size = 0x12000, scoped, tag = 'internal scratch']
  %s0 = inlined_call_operand.vmem [shape: bf16[16,128], index: 0, kind: input, shape index: {}]
  %s1 = inlined_call_operand.vmem [shape: f32[16,1], index: 1, kind: input, shape index: {}]
  %s2 = inlined_call_operand.hbm [shape: bf16[128,512], index: 2, kind: input, shape index: {}]
  %s3 = inlined_call_operand.vmem [shape: f32[1,512], index: 3, kind: input, shape index: {}]
  %s4 = inlined_call_operand.vmem [shape: f32[1,512], index: 4, kind: input, shape index: {}]
  %s5 = inlined_call_operand.hbm [shape: bf16[512,256], index: 5, kind: input, shape index: {}]
  %s6 = inlined_call_operand.vmem [shape: f32[1,256], index: 6, kind: input, shape index: {}]
  %s7 = inlined_call_operand.vmem [shape: f32[1,256], index: 7, kind: input, shape index: {}]
  %s8 = inlined_call_operand.vmem [shape: f32[1,256], index: 8, kind: input, shape index: {}]
  %s9 = inlined_call_operand.hbm [shape: bf16[256,128], index: 9, kind: input, shape index: {}]
  %s10 = inlined_call_operand.vmem [shape: f32[1,128], index: 10, kind: input, shape index: {}]
  %s11 = inlined_call_operand.vmem [shape: f32[1,128], index: 11, kind: input, shape index: {}]
  %s12 = inlined_call_operand.vmem [shape: f32[1,128], index: 12, kind: input, shape index: {}]
  %s13 = inlined_call_operand.hbm [shape: bf16[128,896], index: 13, kind: input, shape index: {}]
  %s14 = inlined_call_operand.vmem [shape: f32[1,896], index: 14, kind: input, shape index: {}]
  %s15 = inlined_call_operand.hbm [shape: f32[16,896], index: 15, kind: output, shape index: {}]
  %s16 = sld [smem:[#allocation0]]
  $region86: #{tpu_custom_call.1} parent=0
    _
  %s18 = ssub.s32 1, %s16
  %s19 = scalar_select 0, %s18, %s16
  $region1: #{tpu_custom_call.1} parent=0
    #allocation2 [shape = 'u8[131072]{0}', space=vmem, size = 0x20000, scoped, tag = 'input window, operand 2, single buffered']
    #allocation3 [shape = 's32[1]{0}', space=sflag, size = 0x4, scoped, tag = 'scoped memory for tpu_custom_call.1']
    #allocation4 [shape = 's32[1]{0}', space=sflag, size = 0x4, scoped, tag = 'scoped memory for tpu_custom_call.1']
    #allocation5 [shape = 'u8[262144]{0}', space=vmem, size = 0x40000, scoped, tag = 'input window, operand 5, single buffered']
    #allocation6 [shape = 's32[1]{0}', space=sflag, size = 0x4, scoped, tag = 'scoped memory for tpu_custom_call.1']
    #allocation7 [shape = 'u8[65536]{0}', space=vmem, size = 0x10000, scoped, tag = 'input window, operand 9, single buffered']
    #allocation8 [shape = 'u8[229376]{0}', space=vmem, size = 0x38000, scoped, tag = 'input window, operand 13, single buffered']
    #allocation9 [shape = 's32[1]{0}', space=sflag, size = 0x4, scoped, tag = 'scoped memory for tpu_custom_call.1']
    #allocation10 [shape = 'u8[57344]{0}', space=vmem, size = 0xe000, scoped, tag = 'output window, operand 0, single buffered']
    %20 = vsyncpa [#allocation3], 0
    %21 = vsyncpa [#allocation6], 0
    %22 = vsyncpa [#allocation9], 0
    %23 = vsyncpa [#allocation4], 0
    // Predicated region
    $region2: #{tpu_custom_call.1} parent=1 // pred_check
      _
    $region3: #{tpu_custom_call.1} parent=1 // pred_check_branch
      %25 = sbr.rel (0) target = $region5
    $region4: #{tpu_custom_call.1} parent=1 // pred_region
      _
    $region5: #{tpu_custom_call.1} parent=1 // pred_fallthru
      _
    // Predicated region
    $region6: #{tpu_custom_call.1} parent=1 // pred_check
      _
    $region7: #{tpu_custom_call.1} parent=1 // pred_check_branch
      %27 = sbr.rel (0) target = $region9
    $region8: #{tpu_custom_call.1} parent=1 // pred_region
      _
    $region9: #{tpu_custom_call.1} parent=1 // pred_fallthru
      _
    // Predicated region
    $region10: #{tpu_custom_call.1} parent=1 // pred_check
      _
    $region11: #{tpu_custom_call.1} parent=1 // pred_check_branch
      %29 = sbr.rel (0) target = $region13
    $region12: #{tpu_custom_call.1} parent=1 // pred_region
      %s31 = ssub.s32 4096, 4096
      %32 = vsyncadd [#allocation3], %s31
      %s33 = sshll.u32 [#allocation2], 4
      %s34 = int_to_ptr.vmem [resolvable:$true] %s33
      %39 = dma.hbm_to_vmem [thread:$0]  %s2, 4096, %s34, [#allocation3], 256, 256, 16
    $region13: #{tpu_custom_call.1} parent=1 // pred_fallthru
      _
    // Predicated region
    $region14: #{tpu_custom_call.1} parent=1 // pred_check
      _
    $region15: #{tpu_custom_call.1} parent=1 // pred_check_branch
      %41 = sbr.rel (0) target = $region17
    $region16: #{tpu_custom_call.1} parent=1 // pred_region
      _
    $region17: #{tpu_custom_call.1} parent=1 // pred_fallthru
      _
    // Predicated region
    $region18: #{tpu_custom_call.1} parent=1 // pred_check
      _
    $region19: #{tpu_custom_call.1} parent=1 // pred_check_branch
      %43 = sbr.rel (0) target = $region21
    $region20: #{tpu_custom_call.1} parent=1 // pred_region
      _
    $region21: #{tpu_custom_call.1} parent=1 // pred_fallthru
      _
    // Predicated region
    $region22: #{tpu_custom_call.1} parent=1 // pred_check
      _
    $region23: #{tpu_custom_call.1} parent=1 // pred_check_branch
      %45 = sbr.rel (0) target = $region25
    $region24: #{tpu_custom_call.1} parent=1 // pred_region
      %s47 = ssub.s32 8192, 8192
      %48 = vsyncadd [#allocation6], %s47
      %s49 = sshll.u32 [#allocation5], 4
      %s50 = int_to_ptr.vmem [resolvable:$true] %s49
      %55 = dma.hbm_to_vmem [thread:$0]  %s5, 8192, %s50, [#allocation6], 128, 128, 8
    $region25: #{tpu_custom_call.1} parent=1 // pred_fallthru
      _
    // Predicated region
    $region26: #{tpu_custom_call.1} parent=1 // pred_check
      _
    $region27: #{tpu_custom_call.1} parent=1 // pred_check_branch
      %57 = sbr.rel (0) target = $region29
    $region28: #{tpu_custom_call.1} parent=1 // pred_region
      _
    $region29: #{tpu_custom_call.1} parent=1 // pred_fallthru
      _
    // Predicated region
    $region30: #{tpu_custom_call.1} parent=1 // pred_check
      _
    $region31: #{tpu_custom_call.1} parent=1 // pred_check_branch
      %59 = sbr.rel (0) target = $region33
    $region32: #{tpu_custom_call.1} parent=1 // pred_region
      _
    $region33: #{tpu_custom_call.1} parent=1 // pred_fallthru
      _
    // Predicated region
    $region34: #{tpu_custom_call.1} parent=1 // pred_check
      _
    $region35: #{tpu_custom_call.1} parent=1 // pred_check_branch
      %61 = sbr.rel (0) target = $region37
    $region36: #{tpu_custom_call.1} parent=1 // pred_region
      _
    $region37: #{tpu_custom_call.1} parent=1 // pred_fallthru
      _
    // Predicated region
    $region38: #{tpu_custom_call.1} parent=1 // pred_check
      _
    $region39: #{tpu_custom_call.1} parent=1 // pred_check_branch
      %63 = sbr.rel (0) target = $region41
    $region40: #{tpu_custom_call.1} parent=1 // pred_region
      %s65 = ssub.s32 2048, 2048
      %66 = vsyncadd [#allocation6], %s65
      %s67 = sshll.u32 [#allocation7], 4
      %s68 = int_to_ptr.vmem [resolvable:$true] %s67
      %73 = dma.hbm_to_vmem [thread:$0]  %s9, 2048, %s68, [#allocation6], 64, 64, 4
    $region41: #{tpu_custom_call.1} parent=1 // pred_fallthru
      _
    // Predicated region
    $region42: #{tpu_custom_call.1} parent=1 // pred_check
      _
    $region43: #{tpu_custom_call.1} parent=1 // pred_check_branch
      %75 = sbr.rel (0) target = $region45
    $region44: #{tpu_custom_call.1} parent=1 // pred_region
      _
    $region45: #{tpu_custom_call.1} parent=1 // pred_fallthru
      _
    // Predicated region
    $region46: #{tpu_custom_call.1} parent=1 // pred_check
      _
    $region47: #{tpu_custom_call.1} parent=1 // pred_check_branch
      %77 = sbr.rel (0) target = $region49
    $region48: #{tpu_custom_call.1} parent=1 // pred_region
      _
    $region49: #{tpu_custom_call.1} parent=1 // pred_fallthru
      _
    // Predicated region
    $region50: #{tpu_custom_call.1} parent=1 // pred_check
      _
    $region51: #{tpu_custom_call.1} parent=1 // pred_check_branch
      %79 = sbr.rel (0) target = $region53
    $region52: #{tpu_custom_call.1} parent=1 // pred_region
      _
    $region53: #{tpu_custom_call.1} parent=1 // pred_fallthru
      _
    // Predicated region
    $region54: #{tpu_custom_call.1} parent=1 // pred_check
      _
    $region55: #{tpu_custom_call.1} parent=1 // pred_check_branch
      %81 = sbr.rel (0) target = $region57
    $region56: #{tpu_custom_call.1} parent=1 // pred_region
      %s83 = ssub.s32 7168, 7168
      %84 = vsyncadd [#allocation9], %s83
      %s85 = sshll.u32 [#allocation8], 4
      %s86 = int_to_ptr.vmem [resolvable:$true] %s85
      %91 = dma.hbm_to_vmem [thread:$0]  %s13, 7168, %s86, [#allocation9], 448, 448, 28
    $region57: #{tpu_custom_call.1} parent=1 // pred_fallthru
      _
    // Predicated region
    $region58: #{tpu_custom_call.1} parent=1 // pred_check
      _
    $region59: #{tpu_custom_call.1} parent=1 // pred_check_branch
      %93 = sbr.rel (0) target = $region61
    $region60: #{tpu_custom_call.1} parent=1 // pred_region
      _
    $region61: #{tpu_custom_call.1} parent=1 // pred_fallthru
      _
    // Predicated region
    $region62: #{tpu_custom_call.1} parent=1 // pred_check
      _
    $region63: #{tpu_custom_call.1} parent=1 // pred_check_branch
      %95 = sbr.rel (0) target = $region65
    $region64: #{tpu_custom_call.1} parent=1 // pred_region
      %96 = dma.done [#allocation3], 4096
    $region65: #{tpu_custom_call.1} parent=1 // pred_fallthru
      _
    // Predicated region
    $region66: #{tpu_custom_call.1} parent=1 // pred_check
      _
    $region67: #{tpu_custom_call.1} parent=1 // pred_check_branch
      %98 = sbr.rel (0) target = $region69
    $region68: #{tpu_custom_call.1} parent=1 // pred_region
      %99 = dma.done [#allocation6], 8192
    $region69: #{tpu_custom_call.1} parent=1 // pred_fallthru
      _
    // Predicated region
    $region70: #{tpu_custom_call.1} parent=1 // pred_check
      _
    $region71: #{tpu_custom_call.1} parent=1 // pred_check_branch
      %101 = sbr.rel (0) target = $region73
    $region72: #{tpu_custom_call.1} parent=1 // pred_region
      %102 = dma.done [#allocation6], 2048
    $region73: #{tpu_custom_call.1} parent=1 // pred_fallthru
      _
    // Predicated region
    $region74: #{tpu_custom_call.1} parent=1 // pred_check
      _
    $region75: #{tpu_custom_call.1} parent=1 // pred_check_branch
      %104 = sbr.rel (0) target = $region77
    $region76: #{tpu_custom_call.1} parent=1 // pred_region
      %105 = dma.done [#allocation9], 7168
    $region77: #{tpu_custom_call.1} parent=1 // pred_fallthru
      _
    %v107 = vld [vmem:[%s1] sm:$0xff]
    %v108 = vld [vmem:[%s1 + $0x8] sm:$0xff]
    %v109 = vld [vmem:[%s0] sm:$0xf]
    %v110 = vld [vmem:[%s0 + $0x4] sm:$0xf]
    %v111 = vld [vmem:[#allocation2] sm:$0xff]
    %v112 = vld [vmem:[#allocation2 + $0x8] sm:$0xff]
    %v113 = vld [vmem:[#allocation2 + $0x10] sm:$0xff]
    %v114 = vld [vmem:[#allocation2 + $0x18] sm:$0xff]
    %v115 = vld [vmem:[#allocation2 + $0x20] sm:$0xff]
    %v116 = vld [vmem:[#allocation2 + $0x28] sm:$0xff]
    %v117 = vld [vmem:[#allocation2 + $0x30] sm:$0xff]
    %v118 = vld [vmem:[#allocation2 + $0x38] sm:$0xff]
    %v119 = vld [vmem:[#allocation2 + $0x40] sm:$0xff]
    %v120 = vld [vmem:[#allocation2 + $0x48] sm:$0xff]
    %v121 = vld [vmem:[#allocation2 + $0x50] sm:$0xff]
    %v122 = vld [vmem:[#allocation2 + $0x58] sm:$0xff]
    %v123 = vld [vmem:[#allocation2 + $0x60] sm:$0xff]
    %v124 = vld [vmem:[#allocation2 + $0x68] sm:$0xff]
    %v125 = vld [vmem:[#allocation2 + $0x70] sm:$0xff]
    %v126 = vld [vmem:[#allocation2 + $0x78] sm:$0xff]
    %v127 = vld [vmem:[#allocation2 + $0x80] sm:$0xff]
    %v128 = vld [vmem:[#allocation2 + $0x88] sm:$0xff]
    %v129 = vld [vmem:[#allocation2 + $0x90] sm:$0xff]
    %v130 = vld [vmem:[#allocation2 + $0x98] sm:$0xff]
    %v131 = vld [vmem:[#allocation2 + $0xa0] sm:$0xff]
    %v132 = vld [vmem:[#allocation2 + $0xa8] sm:$0xff]
    %v133 = vld [vmem:[#allocation2 + $0xb0] sm:$0xff]
    %v134 = vld [vmem:[#allocation2 + $0xb8] sm:$0xff]
    %v135 = vld [vmem:[#allocation2 + $0xc0] sm:$0xff]
    %v136 = vld [vmem:[#allocation2 + $0xc8] sm:$0xff]
    %v137 = vld [vmem:[#allocation2 + $0xd0] sm:$0xff]
    %v138 = vld [vmem:[#allocation2 + $0xd8] sm:$0xff]
    %v139 = vld [vmem:[#allocation2 + $0xe0] sm:$0xff]
    %v140 = vld [vmem:[#allocation2 + $0xe8] sm:$0xff]
    %v141 = vld [vmem:[#allocation2 + $0xf0] sm:$0xff]
    %v142 = vld [vmem:[#allocation2 + $0xf8] sm:$0xff]
    %v145 = vunpack.c.l.b16 %v109
    %v146 = vunpack.c.l.b16 %v110
    %v147 = vpack.c.b16 %v146, %v145
    %v181 = vunpack.c.l.b16 %v111
    %v182 = vunpack.c.h.b16 %v111
    %v183 = vunpack.c.l.b16 %v112
    %v184 = vunpack.c.h.b16 %v112
    %v185 = vunpack.c.l.b16 %v113
    %v186 = vunpack.c.h.b16 %v113
    %v187 = vunpack.c.l.b16 %v114
    %v188 = vunpack.c.h.b16 %v114
    %v189 = vunpack.c.l.b16 %v115
    %v190 = vunpack.c.h.b16 %v115
    %v191 = vunpack.c.l.b16 %v116
    %v192 = vunpack.c.h.b16 %v116
    %v193 = vunpack.c.l.b16 %v117
    %v194 = vunpack.c.h.b16 %v117
    %v195 = vunpack.c.l.b16 %v118
    %v196 = vunpack.c.h.b16 %v118
    %v197 = vunpack.c.l.b16 %v119
    %v198 = vunpack.c.h.b16 %v119
    %v199 = vunpack.c.l.b16 %v120
    %v200 = vunpack.c.h.b16 %v120
    %v201 = vunpack.c.l.b16 %v121
    %v202 = vunpack.c.h.b16 %v121
    %v203 = vunpack.c.l.b16 %v122
    %v204 = vunpack.c.h.b16 %v122
    %v205 = vunpack.c.l.b16 %v123
    %v206 = vunpack.c.h.b16 %v123
    %v207 = vunpack.c.l.b16 %v124
    %v208 = vunpack.c.h.b16 %v124
    %v209 = vunpack.c.l.b16 %v125
    %v210 = vunpack.c.h.b16 %v125
    %v211 = vunpack.c.l.b16 %v126
    %v212 = vunpack.c.h.b16 %v126
    %v213 = vunpack.c.l.b16 %v127
    %v214 = vunpack.c.h.b16 %v127
    %v215 = vunpack.c.l.b16 %v128
    %v216 = vunpack.c.h.b16 %v128
    %v217 = vunpack.c.l.b16 %v129
    %v218 = vunpack.c.h.b16 %v129
    %v219 = vunpack.c.l.b16 %v130
    %v220 = vunpack.c.h.b16 %v130
    %v221 = vunpack.c.l.b16 %v131
    %v222 = vunpack.c.h.b16 %v131
    %v223 = vunpack.c.l.b16 %v132
    %v224 = vunpack.c.h.b16 %v132
    %v225 = vunpack.c.l.b16 %v133
    %v226 = vunpack.c.h.b16 %v133
    %v227 = vunpack.c.l.b16 %v134
    %v228 = vunpack.c.h.b16 %v134
    %v229 = vunpack.c.l.b16 %v135
    %v230 = vunpack.c.h.b16 %v135
    %v231 = vunpack.c.l.b16 %v136
    %v232 = vunpack.c.h.b16 %v136
    %v233 = vunpack.c.l.b16 %v137
    %v234 = vunpack.c.h.b16 %v137
    %v235 = vunpack.c.l.b16 %v138
    %v236 = vunpack.c.h.b16 %v138
    %v237 = vunpack.c.l.b16 %v139
    %v238 = vunpack.c.h.b16 %v139
    %v239 = vunpack.c.l.b16 %v140
    %v240 = vunpack.c.h.b16 %v140
    %v241 = vunpack.c.l.b16 %v141
    %v242 = vunpack.c.h.b16 %v141
    %v243 = vunpack.c.l.b16 %v142
    %v244 = vunpack.c.h.b16 %v142
    %v245 = vpack.c.b16 %v185, %v181
    %v246 = vpack.c.b16 %v186, %v182
    %v247 = vpack.c.b16 %v187, %v183
    %v248 = vpack.c.b16 %v188, %v184
    %v249 = vpack.c.b16 %v193, %v189
    %v250 = vpack.c.b16 %v194, %v190
    %v251 = vpack.c.b16 %v195, %v191
    %v252 = vpack.c.b16 %v196, %v192
    %v253 = vpack.c.b16 %v201, %v197
    %v254 = vpack.c.b16 %v202, %v198
    %v255 = vpack.c.b16 %v203, %v199
    %v256 = vpack.c.b16 %v204, %v200
    %v257 = vpack.c.b16 %v209, %v205
    %v258 = vpack.c.b16 %v210, %v206
    %v259 = vpack.c.b16 %v211, %v207
    %v260 = vpack.c.b16 %v212, %v208
    %v261 = vpack.c.b16 %v217, %v213
    %v262 = vpack.c.b16 %v218, %v214
    %v263 = vpack.c.b16 %v219, %v215
    %v264 = vpack.c.b16 %v220, %v216
    %v265 = vpack.c.b16 %v225, %v221
    %v266 = vpack.c.b16 %v226, %v222
    %v267 = vpack.c.b16 %v227, %v223
    %v268 = vpack.c.b16 %v228, %v224
    %v269 = vpack.c.b16 %v233, %v229
    %v270 = vpack.c.b16 %v234, %v230
    %v271 = vpack.c.b16 %v235, %v231
    %v272 = vpack.c.b16 %v236, %v232
    %v273 = vpack.c.b16 %v241, %v237
    %v274 = vpack.c.b16 %v242, %v238
    %v275 = vpack.c.b16 %v243, %v239
    %v276 = vpack.c.b16 %v244, %v240
    %309 = vmatprep.subr.bf16.mxu0 %v246
    %310 = vmatpush1.bf16.msra.mxu0 %v245
    %311 = vmatprep.subr.bf16.mxu0 %v250
    %312 = vmatpush1.bf16.msra.mxu0 %v249
    %313 = vmatprep.subr.bf16.mxu0 %v254
    %314 = vmatpush1.bf16.msra.mxu0 %v253
    %315 = vmatprep.subr.bf16.mxu0 %v258
    %316 = vmatpush1.bf16.msra.mxu0 %v257
    %317 = vmatprep.subr.bf16.mxu0 %v262
    %318 = vmatpush1.bf16.msra.mxu0 %v261
    %319 = vmatprep.subr.bf16.mxu0 %v266
    %320 = vmatpush1.bf16.msra.mxu0 %v265
    %321 = vmatprep.subr.bf16.mxu0 %v270
    %322 = vmatpush1.bf16.msra.mxu0 %v269
    %323 = vmatprep.subr.bf16.mxu0 %v274
    %324 = vmatpush1.bf16.msra.mxu0 %v273
    %325 = vmatprep.subr.bf16.mxu0 0
    %326 = vmatpush1.bf16.msra.mxu0 0
    %327 = vmatprep.subr.bf16.mxu0 0
    %328 = vmatpush1.bf16.msra.mxu0 0
    %329 = vmatprep.subr.bf16.mxu0 0
    %330 = vmatpush1.bf16.msra.mxu0 0
    %331 = vmatprep.subr.bf16.mxu0 0
    %332 = vmatpush1.bf16.msra.mxu0 0
    %333 = vmatprep.subr.bf16.mxu0 0
    %334 = vmatpush1.bf16.msra.mxu0 0
    %335 = vmatprep.subr.bf16.mxu0 0
    %336 = vmatpush1.bf16.msra.mxu0 0
    %337 = vmatprep.subr.bf16.mxu0 0
    %338 = vmatpush1.bf16.msra.mxu0 0
    %339 = vmatprep.subr.bf16.mxu0 0
    %340 = vmatpush1.bf16.msra.mxu0 0
    %341 = vmatprep.mubr.bf16.mxu0 0
    %342 = vmatmul.mubr.bf16.gmra.mrb[0].mxu0 %v147
    %v343 = vpop.f32.mrb[0].mxu0
    %v344 = vadd.f32 0.0, %v343
    %v345 = vpop.f32.mrb[0].mxu0
    %v346 = vadd.f32 0.0, %v345
    %v347 = vpop.f32.mrb[0].mxu0
    %v348 = vadd.f32 0.0, %v347
    %v349 = vpop.f32.mrb[0].mxu0
    %v350 = vadd.f32 0.0, %v349
    %351 = vdwg.mxu0
    %352 = vmatprep.subr.bf16.mxu0 %v248
    %353 = vmatpush1.bf16.msra.mxu0 %v247
    %354 = vmatprep.subr.bf16.mxu0 %v252
    %355 = vmatpush1.bf16.msra.mxu0 %v251
    %356 = vmatprep.subr.bf16.mxu0 %v256
    %357 = vmatpush1.bf16.msra.mxu0 %v255
    %358 = vmatprep.subr.bf16.mxu0 %v260
    %359 = vmatpush1.bf16.msra.mxu0 %v259
    %360 = vmatprep.subr.bf16.mxu0 %v264
    %361 = vmatpush1.bf16.msra.mxu0 %v263
    %362 = vmatprep.subr.bf16.mxu0 %v268
    %363 = vmatpush1.bf16.msra.mxu0 %v267
    %364 = vmatprep.subr.bf16.mxu0 %v272
    %365 = vmatpush1.bf16.msra.mxu0 %v271
    %366 = vmatprep.subr.bf16.mxu0 %v276
    %367 = vmatpush1.bf16.msra.mxu0 %v275
    %368 = vmatprep.subr.bf16.mxu0 0
    %369 = vmatpush1.bf16.msra.mxu0 0
    %370 = vmatprep.subr.bf16.mxu0 0
    %371 = vmatpush1.bf16.msra.mxu0 0
    %372 = vmatprep.subr.bf16.mxu0 0
    %373 = vmatpush1.bf16.msra.mxu0 0
    %374 = vmatprep.subr.bf16.mxu0 0
    %375 = vmatpush1.bf16.msra.mxu0 0
    %376 = vmatprep.subr.bf16.mxu0 0
    %377 = vmatpush1.bf16.msra.mxu0 0
    %378 = vmatprep.subr.bf16.mxu0 0
    %379 = vmatpush1.bf16.msra.mxu0 0
    %380 = vmatprep.subr.bf16.mxu0 0
    %381 = vmatpush1.bf16.msra.mxu0 0
    %382 = vmatprep.subr.bf16.mxu0 0
    %383 = vmatpush1.bf16.msra.mxu0 0
    %384 = vmatprep.mubr.bf16.mxu0 0
    %385 = vmatmul.mubr.bf16.gmra.mrb[0].mxu0 %v147
    %v386 = vpop.f32.mrb[0].mxu0
    %v387 = vadd.f32 0.0, %v386
    %v388 = vpop.f32.mrb[0].mxu0
    %v389 = vadd.f32 0.0, %v388
    %v390 = vpop.f32.mrb[0].mxu0
    %v391 = vadd.f32 0.0, %v390
    %v392 = vpop.f32.mrb[0].mxu0
    %v393 = vadd.f32 0.0, %v392
    %394 = vdwg.mxu0
    %v395 = vmul.f32 %v344, 0.2
    %v396 = vmul.f32 %v346, 0.2
    %v397 = vmul.f32 %v387, 0.2
    %v398 = vmul.f32 %v389, 0.2
    %v399 = vmul.f32 %v348, 0.2
    %v400 = vmul.f32 %v350, 0.2
    %v401 = vmul.f32 %v391, 0.2
    %v402 = vmul.f32 %v393, 0.2
    %v403 = vmax.f32 %v344, %v395
    %v404 = vmax.f32 %v346, %v396
    %v405 = vmax.f32 %v387, %v397
    %v406 = vmax.f32 %v389, %v398
    %v407 = vmax.f32 %v348, %v399
    %v408 = vmax.f32 %v350, %v400
    %v409 = vmax.f32 %v391, %v401
    %v410 = vmax.f32 %v393, %v402
    %412 = vset.pattern.permute.xlu0 0
    %413 = vperm.xlu0 %412, %v107
    %v414 = vpop.permute.xlu0 %413
    %417 = vset.pattern.permute.xlu0 0
    %418 = vperm.xlu0 %417, %v108
    %v419 = vpop.permute.xlu0 %418
    %v421 = vmul.f32 %v403, %v414
    %v422 = vmul.f32 %v404, %v414
    %v423 = vmul.f32 %v405, %v414
    %v424 = vmul.f32 %v406, %v414
    %v425 = vmul.f32 %v407, %v419
    %v426 = vmul.f32 %v408, %v419
    %v427 = vmul.f32 %v409, %v419
    %v428 = vmul.f32 %v410, %v419
    %v429 = vadd.f32 %v421, %v425
    %v430 = vrot.slane %v429, 4
    %v431 = vadd.f32 %v429, %v430
    %v432 = vrot.slane %v431, 2
    %v433 = vadd.f32 %v431, %v432
    %v434 = vrot.slane %v433, 1
    %v435 = vadd.f32 %v433, %v434
    %v436 = vadd.f32 %v422, %v426
    %v437 = vrot.slane %v436, 4
    %v438 = vadd.f32 %v436, %v437
    %v439 = vrot.slane %v438, 2
    %v440 = vadd.f32 %v438, %v439
    %v441 = vrot.slane %v440, 1
    %v442 = vadd.f32 %v440, %v441
    %v443 = vadd.f32 %v423, %v427
    %v444 = vrot.slane %v443, 4
    %v445 = vadd.f32 %v443, %v444
    %v446 = vrot.slane %v445, 2
    %v447 = vadd.f32 %v445, %v446
    %v448 = vrot.slane %v447, 1
    %v449 = vadd.f32 %v447, %v448
    %v450 = vadd.f32 %v424, %v428
    %v451 = vrot.slane %v450, 4
    %v452 = vadd.f32 %v450, %v451
    %v453 = vrot.slane %v452, 2
    %v454 = vadd.f32 %v452, %v453
    %v455 = vrot.slane %v454, 1
    %v456 = vadd.f32 %v454, %v455
    %v457 = vmul.f32 %v435, 0.125
    %v458 = vmul.f32 %v442, 0.125
    %v459 = vmul.f32 %v449, 0.125
    %v460 = vmul.f32 %v456, 0.125
    %v461 = vmul.f32 %v421, %v421
    %v462 = vmul.f32 %v422, %v422
    %v463 = vmul.f32 %v423, %v423
    %v464 = vmul.f32 %v424, %v424
    %v465 = vmul.f32 %v425, %v425
    %v466 = vmul.f32 %v426, %v426
    %v467 = vmul.f32 %v427, %v427
    %v468 = vmul.f32 %v428, %v428
    %v469 = vadd.f32 %v461, %v465
    %v470 = vrot.slane %v469, 4
    %v471 = vadd.f32 %v469, %v470
    %v472 = vrot.slane %v471, 2
    %v473 = vadd.f32 %v471, %v472
    %v474 = vrot.slane %v473, 1
    %v475 = vadd.f32 %v473, %v474
    %v476 = vadd.f32 %v462, %v466
    %v477 = vrot.slane %v476, 4
    %v478 = vadd.f32 %v476, %v477
    %v479 = vrot.slane %v478, 2
    %v480 = vadd.f32 %v478, %v479
    %v481 = vrot.slane %v480, 1
    %v482 = vadd.f32 %v480, %v481
    %v483 = vadd.f32 %v463, %v467
    %v484 = vrot.slane %v483, 4
    %v485 = vadd.f32 %v483, %v484
    %v486 = vrot.slane %v485, 2
    %v487 = vadd.f32 %v485, %v486
    %v488 = vrot.slane %v487, 1
    %v489 = vadd.f32 %v487, %v488
    %v490 = vadd.f32 %v464, %v468
    %v491 = vrot.slane %v490, 4
    %v492 = vadd.f32 %v490, %v491
    %v493 = vrot.slane %v492, 2
    %v494 = vadd.f32 %v492, %v493
    %v495 = vrot.slane %v494, 1
    %v496 = vadd.f32 %v494, %v495
    %v497 = vmul.f32 %v475, 0.125
    %v498 = vmul.f32 %v482, 0.125
    %v499 = vmul.f32 %v489, 0.125
    %v500 = vmul.f32 %v496, 0.125
    %v501 = vmul.f32 %v457, %v457
    %v502 = vmul.f32 %v458, %v458
    %v503 = vmul.f32 %v459, %v459
    %v504 = vmul.f32 %v460, %v460
    %v505 = vsub.f32 %v497, %v501
    %v506 = vsub.f32 %v498, %v502
    %v507 = vsub.f32 %v499, %v503
    %v508 = vsub.f32 %v500, %v504
    %v509 = vmax.f32 %v505, 0.0
    %v510 = vmax.f32 %v506, 0.0
    %v511 = vmax.f32 %v507, 0.0
    %v512 = vmax.f32 %v508, 0.0
    %v513 = vld [vmem:[%s3] sm:$0xf]
    %v514 = vadd.f32 %v509, 1e-05
    %v515 = vadd.f32 %v510, 1e-05
    %v516 = vadd.f32 %v511, 1e-05
    %v517 = vadd.f32 %v512, 1e-05
    %v518 = vrsqrt.pop %v514
    %v519 = vrsqrt.pop %v515
    %v520 = vrsqrt.pop %v516
    %v521 = vrsqrt.pop %v517
    %v526 = vcombine.low %v518, %v519
    %v527 = vcombine.low %v520, %v521
    %v529 = vunpack.c.l.s4 1966171168
    %v530 = vunpack.c.0.s8 %v529
    %v531 = vlaneseq
    %v532 = vshrl.u32 %v531, 7
    %v533 = vsub.s32 %v530, %v532
    %v534 = vrot.slane %v526, %v533
    %v536 = vunpack.c.l.s4 1966171168
    %v537 = vunpack.c.0.s8 %v536
    %v538 = vlaneseq
    %v539 = vshrl.u32 %v538, 7
    %v540 = vsub.s32 %v537, %v539
    %v541 = vrot.slane %v527, %v540
    %v542 = vcombine.low %v534, %v541
    %v544 = vunpack.c.l.s4 1966171168
    %v545 = vunpack.c.0.s8 %v544
    %v546 = vlaneseq
    %v547 = vshrl.u32 %v546, 7
    %v548 = vsub.s32 %v545, %v547
    %v549 = vrot.slane %v542, %v548
    %v551 = vmul.f32 %v513, %v549
    %v552 = vld [vmem:[%s4] sm:$0xf]
    %v554 = vlaneseq
    %v555 = vshrl.u32 %v554, 7
    %v556 = vsub.s32 0, %v555
    %v557 = vrot.slane %v551, %v556
    %v558 = vlaneseq
    %v559 = vshrl.u32 %v558, 7
    %v560 = vsub.s32 1, %v559
    %v561 = vrot.slane %v551, %v560
    %v562 = vlaneseq
    %v563 = vshrl.u32 %v562, 7
    %v564 = vsub.s32 2, %v563
    %v565 = vrot.slane %v551, %v564
    %v566 = vlaneseq
    %v567 = vshrl.u32 %v566, 7
    %v568 = vsub.s32 3, %v567
    %v569 = vrot.slane %v551, %v568
    %v574 = vmul.f32 %v457, %v557
    %v575 = vmul.f32 %v458, %v561
    %v576 = vmul.f32 %v459, %v565
    %v577 = vmul.f32 %v460, %v569
    %v582 = vcombine.low %v574, %v575
    %v583 = vcombine.low %v576, %v577
    %v585 = vunpack.c.l.s4 1966171168
    %v586 = vunpack.c.0.s8 %v585
    %v587 = vlaneseq
    %v588 = vshrl.u32 %v587, 7
    %v589 = vsub.s32 %v586, %v588
    %v590 = vrot.slane %v582, %v589
    %v592 = vunpack.c.l.s4 1966171168
    %v593 = vunpack.c.0.s8 %v592
    %v594 = vlaneseq
    %v595 = vshrl.u32 %v594, 7
    %v596 = vsub.s32 %v593, %v595
    %v597 = vrot.slane %v583, %v596
    %v598 = vcombine.low %v590, %v597
    %v600 = vunpack.c.l.s4 1966171168
    %v601 = vunpack.c.0.s8 %v600
    %v602 = vlaneseq
    %v603 = vshrl.u32 %v602, 7
    %v604 = vsub.s32 %v601, %v603
    %v605 = vrot.slane %v598, %v604
    %v607 = vsub.f32 %v552, %v605
    %v608 = vmul.f32 %v421, %v557
    %v609 = vmul.f32 %v422, %v561
    %v610 = vmul.f32 %v423, %v565
    %v611 = vmul.f32 %v424, %v569
    %v612 = vmul.f32 %v425, %v557
    %v613 = vmul.f32 %v426, %v561
    %v614 = vmul.f32 %v427, %v565
    %v615 = vmul.f32 %v428, %v569
    %v617 = vlaneseq
    %v618 = vshrl.u32 %v617, 7
    %v619 = vsub.s32 0, %v618
    %v620 = vrot.slane %v607, %v619
    %v621 = vlaneseq
    %v622 = vshrl.u32 %v621, 7
    %v623 = vsub.s32 1, %v622
    %v624 = vrot.slane %v607, %v623
    %v625 = vlaneseq
    %v626 = vshrl.u32 %v625, 7
    %v627 = vsub.s32 2, %v626
    %v628 = vrot.slane %v607, %v627
    %v629 = vlaneseq
    %v630 = vshrl.u32 %v629, 7
    %v631 = vsub.s32 3, %v630
    %v632 = vrot.slane %v607, %v631
    %v637 = vadd.f32 %v608, %v620
    %v638 = vadd.f32 %v609, %v624
    %v639 = vadd.f32 %v610, %v628
    %v640 = vadd.f32 %v611, %v632
    %v641 = vadd.f32 %v612, %v620
    %v642 = vadd.f32 %v613, %v624
    %v643 = vadd.f32 %v614, %v628
    %v644 = vadd.f32 %v615, %v632
    %v645 = vpack.c.bf16 %v641, %v637
    %v646 = vpack.c.bf16 %v642, %v638
    %v647 = vpack.c.bf16 %v643, %v639
    %v648 = vpack.c.bf16 %v644, %v640
    %v649 = vld [vmem:[#allocation5] sm:$0xff]
    %v650 = vld [vmem:[#allocation5 + $0x8] sm:$0xff]
    %v651 = vld [vmem:[#allocation5 + $0x10] sm:$0xff]
    %v652 = vld [vmem:[#allocation5 + $0x18] sm:$0xff]
    %v653 = vld [vmem:[#allocation5 + $0x20] sm:$0xff]
    %v654 = vld [vmem:[#allocation5 + $0x28] sm:$0xff]
    %v655 = vld [vmem:[#allocation5 + $0x30] sm:$0xff]
    %v656 = vld [vmem:[#allocation5 + $0x38] sm:$0xff]
    %v657 = vld [vmem:[#allocation5 + $0x40] sm:$0xff]
    %v658 = vld [vmem:[#allocation5 + $0x48] sm:$0xff]
    %v659 = vld [vmem:[#allocation5 + $0x50] sm:$0xff]
    %v660 = vld [vmem:[#allocation5 + $0x58] sm:$0xff]
    %v661 = vld [vmem:[#allocation5 + $0x60] sm:$0xff]
    %v662 = vld [vmem:[#allocation5 + $0x68] sm:$0xff]
    %v663 = vld [vmem:[#allocation5 + $0x70] sm:$0xff]
    %v664 = vld [vmem:[#allocation5 + $0x78] sm:$0xff]
    %v665 = vld [vmem:[#allocation5 + $0x80] sm:$0xff]
    %v666 = vld [vmem:[#allocation5 + $0x88] sm:$0xff]
    %v667 = vld [vmem:[#allocation5 + $0x90] sm:$0xff]
    %v668 = vld [vmem:[#allocation5 + $0x98] sm:$0xff]
    %v669 = vld [vmem:[#allocation5 + $0xa0] sm:$0xff]
    %v670 = vld [vmem:[#allocation5 + $0xa8] sm:$0xff]
    %v671 = vld [vmem:[#allocation5 + $0xb0] sm:$0xff]
    %v672 = vld [vmem:[#allocation5 + $0xb8] sm:$0xff]
    %v673 = vld [vmem:[#allocation5 + $0xc0] sm:$0xff]
    %v674 = vld [vmem:[#allocation5 + $0xc8] sm:$0xff]
    %v675 = vld [vmem:[#allocation5 + $0xd0] sm:$0xff]
    %v676 = vld [vmem:[#allocation5 + $0xd8] sm:$0xff]
    %v677 = vld [vmem:[#allocation5 + $0xe0] sm:$0xff]
    %v678 = vld [vmem:[#allocation5 + $0xe8] sm:$0xff]
    %v679 = vld [vmem:[#allocation5 + $0xf0] sm:$0xff]
    %v680 = vld [vmem:[#allocation5 + $0xf8] sm:$0xff]
    %v681 = vld [vmem:[#allocation5 + $0x100] sm:$0xff]
    %v682 = vld [vmem:[#allocation5 + $0x108] sm:$0xff]
    %v683 = vld [vmem:[#allocation5 + $0x110] sm:$0xff]
    %v684 = vld [vmem:[#allocation5 + $0x118] sm:$0xff]
    %v685 = vld [vmem:[#allocation5 + $0x120] sm:$0xff]
    %v686 = vld [vmem:[#allocation5 + $0x128] sm:$0xff]
    %v687 = vld [vmem:[#allocation5 + $0x130] sm:$0xff]
    %v688 = vld [vmem:[#allocation5 + $0x138] sm:$0xff]
    %v689 = vld [vmem:[#allocation5 + $0x140] sm:$0xff]
    %v690 = vld [vmem:[#allocation5 + $0x148] sm:$0xff]
    %v691 = vld [vmem:[#allocation5 + $0x150] sm:$0xff]
    %v692 = vld [vmem:[#allocation5 + $0x158] sm:$0xff]
    %v693 = vld [vmem:[#allocation5 + $0x160] sm:$0xff]
    %v694 = vld [vmem:[#allocation5 + $0x168] sm:$0xff]
    %v695 = vld [vmem:[#allocation5 + $0x170] sm:$0xff]
    %v696 = vld [vmem:[#allocation5 + $0x178] sm:$0xff]
    %v697 = vld [vmem:[#allocation5 + $0x180] sm:$0xff]
    %v698 = vld [vmem:[#allocation5 + $0x188] sm:$0xff]
    %v699 = vld [vmem:[#allocation5 + $0x190] sm:$0xff]
    %v700 = vld [vmem:[#allocation5 + $0x198] sm:$0xff]
    %v701 = vld [vmem:[#allocation5 + $0x1a0] sm:$0xff]
    %v702 = vld [vmem:[#allocation5 + $0x1a8] sm:$0xff]
    %v703 = vld [vmem:[#allocation5 + $0x1b0] sm:$0xff]
    %v704 = vld [vmem:[#allocation5 + $0x1b8] sm:$0xff]
    %v705 = vld [vmem:[#allocation5 + $0x1c0] sm:$0xff]
    %v706 = vld [vmem:[#allocation5 + $0x1c8] sm:$0xff]
    %v707 = vld [vmem:[#allocation5 + $0x1d0] sm:$0xff]
    %v708 = vld [vmem:[#allocation5 + $0x1d8] sm:$0xff]
    %v709 = vld [vmem:[#allocation5 + $0x1e0] sm:$0xff]
    %v710 = vld [vmem:[#allocation5 + $0x1e8] sm:$0xff]
    %v711 = vld [vmem:[#allocation5 + $0x1f0] sm:$0xff]
    %v712 = vld [vmem:[#allocation5 + $0x1f8] sm:$0xff]
    %v713 = vld [vmem:[%s6] sm:$0x3]
    %v715 = vlaneseq
    %v716 = vshrl.u32 %v715, 7
    %v717 = vsub.s32 0, %v716
    %v718 = vrot.slane %v713, %v717
    %v719 = vlaneseq
    %v720 = vshrl.u32 %v719, 7
    %v721 = vsub.s32 1, %v720
    %v722 = vrot.slane %v713, %v721
    %v789 = vunpack.c.l.b16 %v649
    %v790 = vunpack.c.h.b16 %v649
    %v791 = vunpack.c.l.b16 %v650
    %v792 = vunpack.c.h.b16 %v650
    %v793 = vunpack.c.l.b16 %v651
    %v794 = vunpack.c.h.b16 %v651
    %v795 = vunpack.c.l.b16 %v652
    %v796 = vunpack.c.h.b16 %v652
    %v797 = vunpack.c.l.b16 %v653
    %v798 = vunpack.c.h.b16 %v653
    %v799 = vunpack.c.l.b16 %v654
    %v800 = vunpack.c.h.b16 %v654
    %v801 = vunpack.c.l.b16 %v655
    %v802 = vunpack.c.h.b16 %v655
    %v803 = vunpack.c.l.b16 %v656
    %v804 = vunpack.c.h.b16 %v656
    %v805 = vunpack.c.l.b16 %v657
    %v806 = vunpack.c.h.b16 %v657
    %v807 = vunpack.c.l.b16 %v658
    %v808 = vunpack.c.h.b16 %v658
    %v809 = vunpack.c.l.b16 %v659
    %v810 = vunpack.c.h.b16 %v659
    %v811 = vunpack.c.l.b16 %v660
    %v812 = vunpack.c.h.b16 %v660
    %v813 = vunpack.c.l.b16 %v661
    %v814 = vunpack.c.h.b16 %v661
    %v815 = vunpack.c.l.b16 %v662
    %v816 = vunpack.c.h.b16 %v662
    %v817 = vunpack.c.l.b16 %v663
    %v818 = vunpack.c.h.b16 %v663
    %v819 = vunpack.c.l.b16 %v664
    %v820 = vunpack.c.h.b16 %v664
    %v821 = vunpack.c.l.b16 %v665
    %v822 = vunpack.c.h.b16 %v665
    %v823 = vunpack.c.l.b16 %v666
    %v824 = vunpack.c.h.b16 %v666
    %v825 = vunpack.c.l.b16 %v667
    %v826 = vunpack.c.h.b16 %v667
    %v827 = vunpack.c.l.b16 %v668
    %v828 = vunpack.c.h.b16 %v668
    %v829 = vunpack.c.l.b16 %v669
    %v830 = vunpack.c.h.b16 %v669
    %v831 = vunpack.c.l.b16 %v670
    %v832 = vunpack.c.h.b16 %v670
    %v833 = vunpack.c.l.b16 %v671
    %v834 = vunpack.c.h.b16 %v671
    %v835 = vunpack.c.l.b16 %v672
    %v836 = vunpack.c.h.b16 %v672
    %v837 = vunpack.c.l.b16 %v673
    %v838 = vunpack.c.h.b16 %v673
    %v839 = vunpack.c.l.b16 %v674
    %v840 = vunpack.c.h.b16 %v674
    %v841 = vunpack.c.l.b16 %v675
    %v842 = vunpack.c.h.b16 %v675
    %v843 = vunpack.c.l.b16 %v676
    %v844 = vunpack.c.h.b16 %v676
    %v845 = vunpack.c.l.b16 %v677
    %v846 = vunpack.c.h.b16 %v677
    %v847 = vunpack.c.l.b16 %v678
    %v848 = vunpack.c.h.b16 %v678
    %v849 = vunpack.c.l.b16 %v679
    %v850 = vunpack.c.h.b16 %v679
    %v851 = vunpack.c.l.b16 %v680
    %v852 = vunpack.c.h.b16 %v680
    %v853 = vunpack.c.l.b16 %v681
    %v854 = vunpack.c.h.b16 %v681
    %v855 = vunpack.c.l.b16 %v682
    %v856 = vunpack.c.h.b16 %v682
    %v857 = vunpack.c.l.b16 %v683
    %v858 = vunpack.c.h.b16 %v683
    %v859 = vunpack.c.l.b16 %v684
    %v860 = vunpack.c.h.b16 %v684
    %v861 = vunpack.c.l.b16 %v685
    %v862 = vunpack.c.h.b16 %v685
    %v863 = vunpack.c.l.b16 %v686
    %v864 = vunpack.c.h.b16 %v686
    %v865 = vunpack.c.l.b16 %v687
    %v866 = vunpack.c.h.b16 %v687
    %v867 = vunpack.c.l.b16 %v688
    %v868 = vunpack.c.h.b16 %v688
    %v869 = vunpack.c.l.b16 %v689
    %v870 = vunpack.c.h.b16 %v689
    %v871 = vunpack.c.l.b16 %v690
    %v872 = vunpack.c.h.b16 %v690
    %v873 = vunpack.c.l.b16 %v691
    %v874 = vunpack.c.h.b16 %v691
    %v875 = vunpack.c.l.b16 %v692
    %v876 = vunpack.c.h.b16 %v692
    %v877 = vunpack.c.l.b16 %v693
    %v878 = vunpack.c.h.b16 %v693
    %v879 = vunpack.c.l.b16 %v694
    %v880 = vunpack.c.h.b16 %v694
    %v881 = vunpack.c.l.b16 %v695
    %v882 = vunpack.c.h.b16 %v695
    %v883 = vunpack.c.l.b16 %v696
    %v884 = vunpack.c.h.b16 %v696
    %v885 = vunpack.c.l.b16 %v697
    %v886 = vunpack.c.h.b16 %v697
    %v887 = vunpack.c.l.b16 %v698
    %v888 = vunpack.c.h.b16 %v698
    %v889 = vunpack.c.l.b16 %v699
    %v890 = vunpack.c.h.b16 %v699
    %v891 = vunpack.c.l.b16 %v700
    %v892 = vunpack.c.h.b16 %v700
    %v893 = vunpack.c.l.b16 %v701
    %v894 = vunpack.c.h.b16 %v701
    %v895 = vunpack.c.l.b16 %v702
    %v896 = vunpack.c.h.b16 %v702
    %v897 = vunpack.c.l.b16 %v703
    %v898 = vunpack.c.h.b16 %v703
    %v899 = vunpack.c.l.b16 %v704
    %v900 = vunpack.c.h.b16 %v704
    %v901 = vunpack.c.l.b16 %v705
    %v902 = vunpack.c.h.b16 %v705
    %v903 = vunpack.c.l.b16 %v706
    %v904 = vunpack.c.h.b16 %v706
    %v905 = vunpack.c.l.b16 %v707
    %v906 = vunpack.c.h.b16 %v707
    %v907 = vunpack.c.l.b16 %v708
    %v908 = vunpack.c.h.b16 %v708
    %v909 = vunpack.c.l.b16 %v709
    %v910 = vunpack.c.h.b16 %v709
    %v911 = vunpack.c.l.b16 %v710
    %v912 = vunpack.c.h.b16 %v710
    %v913 = vunpack.c.l.b16 %v711
    %v914 = vunpack.c.h.b16 %v711
    %v915 = vunpack.c.l.b16 %v712
    %v916 = vunpack.c.h.b16 %v712
    %v917 = vpack.c.b16 %v791, %v789
    %v918 = vpack.c.b16 %v792, %v790
    %v919 = vpack.c.b16 %v795, %v793
    %v920 = vpack.c.b16 %v796, %v794
    %v921 = vpack.c.b16 %v799, %v797
    %v922 = vpack.c.b16 %v800, %v798
    %v923 = vpack.c.b16 %v803, %v801
    %v924 = vpack.c.b16 %v804, %v802
    %v925 = vpack.c.b16 %v807, %v805
    %v926 = vpack.c.b16 %v808, %v806
    %v927 = vpack.c.b16 %v811, %v809
    %v928 = vpack.c.b16 %v812, %v810
    %v929 = vpack.c.b16 %v815, %v813
    %v930 = vpack.c.b16 %v816, %v814
    %v931 = vpack.c.b16 %v819, %v817
    %v932 = vpack.c.b16 %v820, %v818
    %v933 = vpack.c.b16 %v823, %v821
    %v934 = vpack.c.b16 %v824, %v822
    %v935 = vpack.c.b16 %v827, %v825
    %v936 = vpack.c.b16 %v828, %v826
    %v937 = vpack.c.b16 %v831, %v829
    %v938 = vpack.c.b16 %v832, %v830
    %v939 = vpack.c.b16 %v835, %v833
    %v940 = vpack.c.b16 %v836, %v834
    %v941 = vpack.c.b16 %v839, %v837
    %v942 = vpack.c.b16 %v840, %v838
    %v943 = vpack.c.b16 %v843, %v841
    %v944 = vpack.c.b16 %v844, %v842
    %v945 = vpack.c.b16 %v847, %v845
    %v946 = vpack.c.b16 %v848, %v846
    %v947 = vpack.c.b16 %v851, %v849
    %v948 = vpack.c.b16 %v852, %v850
    %v949 = vpack.c.b16 %v855, %v853
    %v950 = vpack.c.b16 %v856, %v854
    %v951 = vpack.c.b16 %v859, %v857
    %v952 = vpack.c.b16 %v860, %v858
    %v953 = vpack.c.b16 %v863, %v861
    %v954 = vpack.c.b16 %v864, %v862
    %v955 = vpack.c.b16 %v867, %v865
    %v956 = vpack.c.b16 %v868, %v866
    %v957 = vpack.c.b16 %v871, %v869
    %v958 = vpack.c.b16 %v872, %v870
    %v959 = vpack.c.b16 %v875, %v873
    %v960 = vpack.c.b16 %v876, %v874
    %v961 = vpack.c.b16 %v879, %v877
    %v962 = vpack.c.b16 %v880, %v878
    %v963 = vpack.c.b16 %v883, %v881
    %v964 = vpack.c.b16 %v884, %v882
    %v965 = vpack.c.b16 %v887, %v885
    %v966 = vpack.c.b16 %v888, %v886
    %v967 = vpack.c.b16 %v891, %v889
    %v968 = vpack.c.b16 %v892, %v890
    %v969 = vpack.c.b16 %v895, %v893
    %v970 = vpack.c.b16 %v896, %v894
    %v971 = vpack.c.b16 %v899, %v897
    %v972 = vpack.c.b16 %v900, %v898
    %v973 = vpack.c.b16 %v903, %v901
    %v974 = vpack.c.b16 %v904, %v902
    %v975 = vpack.c.b16 %v907, %v905
    %v976 = vpack.c.b16 %v908, %v906
    %v977 = vpack.c.b16 %v911, %v909
    %v978 = vpack.c.b16 %v912, %v910
    %v979 = vpack.c.b16 %v915, %v913
    %v980 = vpack.c.b16 %v916, %v914
    %1045 = vmatprep.subr.bf16.mxu0 %v918
    %1046 = vmatpush1.bf16.msra.mxu0 %v917
    %1047 = vmatprep.subr.bf16.mxu0 %v920
    %1048 = vmatpush1.bf16.msra.mxu0 %v919
    %1049 = vmatprep.subr.bf16.mxu0 %v922
    %1050 = vmatpush1.bf16.msra.mxu0 %v921
    %1051 = vmatprep.subr.bf16.mxu0 %v924
    %1052 = vmatpush1.bf16.msra.mxu0 %v923
    %1053 = vmatprep.subr.bf16.mxu0 %v926
    %1054 = vmatpush1.bf16.msra.mxu0 %v925
    %1055 = vmatprep.subr.bf16.mxu0 %v928
    %1056 = vmatpush1.bf16.msra.mxu0 %v927
    %1057 = vmatprep.subr.bf16.mxu0 %v930
    %1058 = vmatpush1.bf16.msra.mxu0 %v929
    %1059 = vmatprep.subr.bf16.mxu0 %v932
    %1060 = vmatpush1.bf16.msra.mxu0 %v931
    %1061 = vmatprep.subr.bf16.mxu0 %v934
    %1062 = vmatpush1.bf16.msra.mxu0 %v933
    %1063 = vmatprep.subr.bf16.mxu0 %v936
    %1064 = vmatpush1.bf16.msra.mxu0 %v935
    %1065 = vmatprep.subr.bf16.mxu0 %v938
    %1066 = vmatpush1.bf16.msra.mxu0 %v937
    %1067 = vmatprep.subr.bf16.mxu0 %v940
    %1068 = vmatpush1.bf16.msra.mxu0 %v939
    %1069 = vmatprep.subr.bf16.mxu0 %v942
    %1070 = vmatpush1.bf16.msra.mxu0 %v941
    %1071 = vmatprep.subr.bf16.mxu0 %v944
    %1072 = vmatpush1.bf16.msra.mxu0 %v943
    %1073 = vmatprep.subr.bf16.mxu0 %v946
    %1074 = vmatpush1.bf16.msra.mxu0 %v945
    %1075 = vmatprep.subr.bf16.mxu0 %v948
    %1076 = vmatpush1.bf16.msra.mxu0 %v947
    %1077 = vmatprep.mubr.bf16.mxu0 %v646
    %1078 = vmatmul.mubr.bf16.gmra.mrb[0].mxu0 %v645
    %v1079 = vpop.f32.mrb[0].mxu0
    %v1080 = vadd.f32 %v718, %v1079
    %v1081 = vpop.f32.mrb[0].mxu0
    %v1082 = vadd.f32 %v722, %v1081
    %v1083 = vpop.f32.mrb[0].mxu0
    %v1084 = vadd.f32 %v718, %v1083
    %v1085 = vpop.f32.mrb[0].mxu0
    %v1086 = vadd.f32 %v722, %v1085
    %1087 = vdwg.mxu0
    %1088 = vmatprep.subr.bf16.mxu0 %v950
    %1089 = vmatpush1.bf16.msra.mxu0 %v949
    %1090 = vmatprep.subr.bf16.mxu0 %v952
    %1091 = vmatpush1.bf16.msra.mxu0 %v951
    %1092 = vmatprep.subr.bf16.mxu0 %v954
    %1093 = vmatpush1.bf16.msra.mxu0 %v953
    %1094 = vmatprep.subr.bf16.mxu0 %v956
    %1095 = vmatpush1.bf16.msra.mxu0 %v955
    %1096 = vmatprep.subr.bf16.mxu0 %v958
    %1097 = vmatpush1.bf16.msra.mxu0 %v957
    %1098 = vmatprep.subr.bf16.mxu0 %v960
    %1099 = vmatpush1.bf16.msra.mxu0 %v959
    %1100 = vmatprep.subr.bf16.mxu0 %v962
    %1101 = vmatpush1.bf16.msra.mxu0 %v961
    %1102 = vmatprep.subr.bf16.mxu0 %v964
    %1103 = vmatpush1.bf16.msra.mxu0 %v963
    %1104 = vmatprep.subr.bf16.mxu0 %v966
    %1105 = vmatpush1.bf16.msra.mxu0 %v965
    %1106 = vmatprep.subr.bf16.mxu0 %v968
    %1107 = vmatpush1.bf16.msra.mxu0 %v967
    %1108 = vmatprep.subr.bf16.mxu0 %v970
    %1109 = vmatpush1.bf16.msra.mxu0 %v969
    %1110 = vmatprep.subr.bf16.mxu0 %v972
    %1111 = vmatpush1.bf16.msra.mxu0 %v971
    %1112 = vmatprep.subr.bf16.mxu0 %v974
    %1113 = vmatpush1.bf16.msra.mxu0 %v973
    %1114 = vmatprep.subr.bf16.mxu0 %v976
    %1115 = vmatpush1.bf16.msra.mxu0 %v975
    %1116 = vmatprep.subr.bf16.mxu0 %v978
    %1117 = vmatpush1.bf16.msra.mxu0 %v977
    %1118 = vmatprep.subr.bf16.mxu0 %v980
    %1119 = vmatpush1.bf16.msra.mxu0 %v979
    %1120 = vmatprep.mubr.bf16.mxu0 %v648
    %1121 = vmatmul.mubr.bf16.gmra.mrb[0].mxu0 %v647
    %v1122 = vpop.f32.mrb[0].mxu0
    %v1123 = vadd.f32 %v1080, %v1122
    %v1124 = vpop.f32.mrb[0].mxu0
    %v1125 = vadd.f32 %v1082, %v1124
    %v1126 = vpop.f32.mrb[0].mxu0
    %v1127 = vadd.f32 %v1084, %v1126
    %v1128 = vpop.f32.mrb[0].mxu0
    %v1129 = vadd.f32 %v1086, %v1128
    %1130 = vdwg.mxu0
    %v1131 = vmul.f32 %v1123, 0.2
    %v1132 = vmul.f32 %v1125, 0.2
    %v1133 = vmul.f32 %v1127, 0.2
    %v1134 = vmul.f32 %v1129, 0.2
    %v1135 = vmax.f32 %v1123, %v1131
    %v1136 = vmax.f32 %v1125, %v1132
    %v1137 = vmax.f32 %v1127, %v1133
    %v1138 = vmax.f32 %v1129, %v1134
    %v1139 = vmul.f32 %v1135, %v414
    %v1140 = vmul.f32 %v1136, %v414
    %v1141 = vmul.f32 %v1137, %v419
    %v1142 = vmul.f32 %v1138, %v419
    %v1143 = vadd.f32 %v1139, %v1141
    %v1144 = vrot.slane %v1143, 4
    %v1145 = vadd.f32 %v1143, %v1144
    %v1146 = vrot.slane %v1145, 2
    %v1147 = vadd.f32 %v1145, %v1146
    %v1148 = vrot.slane %v1147, 1
    %v1149 = vadd.f32 %v1147, %v1148
    %v1150 = vadd.f32 %v1140, %v1142
    %v1151 = vrot.slane %v1150, 4
    %v1152 = vadd.f32 %v1150, %v1151
    %v1153 = vrot.slane %v1152, 2
    %v1154 = vadd.f32 %v1152, %v1153
    %v1155 = vrot.slane %v1154, 1
    %v1156 = vadd.f32 %v1154, %v1155
    %v1157 = vmul.f32 %v1149, 0.125
    %v1158 = vmul.f32 %v1156, 0.125
    %v1159 = vmul.f32 %v1139, %v1139
    %v1160 = vmul.f32 %v1140, %v1140
    %v1161 = vmul.f32 %v1141, %v1141
    %v1162 = vmul.f32 %v1142, %v1142
    %v1163 = vadd.f32 %v1159, %v1161
    %v1164 = vrot.slane %v1163, 4
    %v1165 = vadd.f32 %v1163, %v1164
    %v1166 = vrot.slane %v1165, 2
    %v1167 = vadd.f32 %v1165, %v1166
    %v1168 = vrot.slane %v1167, 1
    %v1169 = vadd.f32 %v1167, %v1168
    %v1170 = vadd.f32 %v1160, %v1162
    %v1171 = vrot.slane %v1170, 4
    %v1172 = vadd.f32 %v1170, %v1171
    %v1173 = vrot.slane %v1172, 2
    %v1174 = vadd.f32 %v1172, %v1173
    %v1175 = vrot.slane %v1174, 1
    %v1176 = vadd.f32 %v1174, %v1175
    %v1177 = vmul.f32 %v1169, 0.125
    %v1178 = vmul.f32 %v1176, 0.125
    %v1179 = vmul.f32 %v1157, %v1157
    %v1180 = vmul.f32 %v1158, %v1158
    %v1181 = vsub.f32 %v1177, %v1179
    %v1182 = vsub.f32 %v1178, %v1180
    %v1183 = vmax.f32 %v1181, 0.0
    %v1184 = vmax.f32 %v1182, 0.0
    %v1185 = vld [vmem:[%s7] sm:$0x3]
    %v1186 = vadd.f32 %v1183, 1e-05
    %v1187 = vadd.f32 %v1184, 1e-05
    %v1188 = vrsqrt.pop %v1186
    %v1189 = vrsqrt.pop %v1187
    %v1192 = vcombine.low %v1188, %v1189
    %v1194 = vunpack.c.l.s4 1966171168
    %v1195 = vunpack.c.0.s8 %v1194
    %v1196 = vlaneseq
    %v1197 = vshrl.u32 %v1196, 7
    %v1198 = vsub.s32 %v1195, %v1197
    %v1199 = vrot.slane %v1192, %v1198
    %v1201 = vunpack.c.l.s4 1966171168
    %v1202 = vunpack.c.0.s8 %v1201
    %v1203 = vlaneseq
    %v1204 = vshrl.u32 %v1203, 7
    %v1205 = vsub.s32 %v1202, %v1204
    %v1206 = vrot.slane %v1199, %v1205
    %v1208 = vmul.f32 %v1185, %v1206
    %v1209 = vld [vmem:[%s8] sm:$0x3]
    %v1211 = vlaneseq
    %v1212 = vshrl.u32 %v1211, 7
    %v1213 = vsub.s32 0, %v1212
    %v1214 = vrot.slane %v1208, %v1213
    %v1215 = vlaneseq
    %v1216 = vshrl.u32 %v1215, 7
    %v1217 = vsub.s32 1, %v1216
    %v1218 = vrot.slane %v1208, %v1217
    %v1221 = vmul.f32 %v1157, %v1214
    %v1222 = vmul.f32 %v1158, %v1218
    %v1225 = vcombine.low %v1221, %v1222
    %v1227 = vunpack.c.l.s4 1966171168
    %v1228 = vunpack.c.0.s8 %v1227
    %v1229 = vlaneseq
    %v1230 = vshrl.u32 %v1229, 7
    %v1231 = vsub.s32 %v1228, %v1230
    %v1232 = vrot.slane %v1225, %v1231
    %v1234 = vunpack.c.l.s4 1966171168
    %v1235 = vunpack.c.0.s8 %v1234
    %v1236 = vlaneseq
    %v1237 = vshrl.u32 %v1236, 7
    %v1238 = vsub.s32 %v1235, %v1237
    %v1239 = vrot.slane %v1232, %v1238
    %v1241 = vsub.f32 %v1209, %v1239
    %v1242 = vmul.f32 %v1139, %v1214
    %v1243 = vmul.f32 %v1140, %v1218
    %v1244 = vmul.f32 %v1141, %v1214
    %v1245 = vmul.f32 %v1142, %v1218
    %v1247 = vlaneseq
    %v1248 = vshrl.u32 %v1247, 7
    %v1249 = vsub.s32 0, %v1248
    %v1250 = vrot.slane %v1241, %v1249
    %v1251 = vlaneseq
    %v1252 = vshrl.u32 %v1251, 7
    %v1253 = vsub.s32 1, %v1252
    %v1254 = vrot.slane %v1241, %v1253
    %v1257 = vadd.f32 %v1242, %v1250
    %v1258 = vadd.f32 %v1243, %v1254
    %v1259 = vadd.f32 %v1244, %v1250
    %v1260 = vadd.f32 %v1245, %v1254
    %v1261 = vpack.c.bf16 %v1259, %v1257
    %v1262 = vpack.c.bf16 %v1260, %v1258
    %v1263 = vld [vmem:[#allocation7] sm:$0xf]
    %v1264 = vld [vmem:[#allocation7 + $0x4] sm:$0xf]
    %v1265 = vld [vmem:[#allocation7 + $0x8] sm:$0xf]
    %v1266 = vld [vmem:[#allocation7 + $0xc] sm:$0xf]
    %v1267 = vld [vmem:[#allocation7 + $0x10] sm:$0xf]
    %v1268 = vld [vmem:[#allocation7 + $0x14] sm:$0xf]
    %v1269 = vld [vmem:[#allocation7 + $0x18] sm:$0xf]
    %v1270 = vld [vmem:[#allocation7 + $0x1c] sm:$0xf]
    %v1271 = vld [vmem:[#allocation7 + $0x20] sm:$0xf]
    %v1272 = vld [vmem:[#allocation7 + $0x24] sm:$0xf]
    %v1273 = vld [vmem:[#allocation7 + $0x28] sm:$0xf]
    %v1274 = vld [vmem:[#allocation7 + $0x2c] sm:$0xf]
    %v1275 = vld [vmem:[#allocation7 + $0x30] sm:$0xf]
    %v1276 = vld [vmem:[#allocation7 + $0x34] sm:$0xf]
    %v1277 = vld [vmem:[#allocation7 + $0x38] sm:$0xf]
    %v1278 = vld [vmem:[#allocation7 + $0x3c] sm:$0xf]
    %v1279 = vld [vmem:[#allocation7 + $0x40] sm:$0xf]
    %v1280 = vld [vmem:[#allocation7 + $0x44] sm:$0xf]
    %v1281 = vld [vmem:[#allocation7 + $0x48] sm:$0xf]
    %v1282 = vld [vmem:[#allocation7 + $0x4c] sm:$0xf]
    %v1283 = vld [vmem:[#allocation7 + $0x50] sm:$0xf]
    %v1284 = vld [vmem:[#allocation7 + $0x54] sm:$0xf]
    %v1285 = vld [vmem:[#allocation7 + $0x58] sm:$0xf]
    %v1286 = vld [vmem:[#allocation7 + $0x5c] sm:$0xf]
    %v1287 = vld [vmem:[#allocation7 + $0x60] sm:$0xf]
    %v1288 = vld [vmem:[#allocation7 + $0x64] sm:$0xf]
    %v1289 = vld [vmem:[#allocation7 + $0x68] sm:$0xf]
    %v1290 = vld [vmem:[#allocation7 + $0x6c] sm:$0xf]
    %v1291 = vld [vmem:[#allocation7 + $0x70] sm:$0xf]
    %v1292 = vld [vmem:[#allocation7 + $0x74] sm:$0xf]
    %v1293 = vld [vmem:[#allocation7 + $0x78] sm:$0xf]
    %v1294 = vld [vmem:[#allocation7 + $0x7c] sm:$0xf]
    %v1295 = vld [vmem:[%s10] sm:$0x1]
    %v1297 = vlaneseq
    %v1298 = vshrl.u32 %v1297, 7
    %v1299 = vsub.s32 0, %v1298
    %v1300 = vrot.slane %v1295, %v1299
    %v1334 = vunpack.c.l.b16 %v1263
    %v1335 = vunpack.c.l.b16 %v1264
    %v1336 = vunpack.c.l.b16 %v1265
    %v1337 = vunpack.c.l.b16 %v1266
    %v1338 = vunpack.c.l.b16 %v1267
    %v1339 = vunpack.c.l.b16 %v1268
    %v1340 = vunpack.c.l.b16 %v1269
    %v1341 = vunpack.c.l.b16 %v1270
    %v1342 = vunpack.c.l.b16 %v1271
    %v1343 = vunpack.c.l.b16 %v1272
    %v1344 = vunpack.c.l.b16 %v1273
    %v1345 = vunpack.c.l.b16 %v1274
    %v1346 = vunpack.c.l.b16 %v1275
    %v1347 = vunpack.c.l.b16 %v1276
    %v1348 = vunpack.c.l.b16 %v1277
    %v1349 = vunpack.c.l.b16 %v1278
    %v1350 = vunpack.c.l.b16 %v1279
    %v1351 = vunpack.c.l.b16 %v1280
    %v1352 = vunpack.c.l.b16 %v1281
    %v1353 = vunpack.c.l.b16 %v1282
    %v1354 = vunpack.c.l.b16 %v1283
    %v1355 = vunpack.c.l.b16 %v1284
    %v1356 = vunpack.c.l.b16 %v1285
    %v1357 = vunpack.c.l.b16 %v1286
    %v1358 = vunpack.c.l.b16 %v1287
    %v1359 = vunpack.c.l.b16 %v1288
    %v1360 = vunpack.c.l.b16 %v1289
    %v1361 = vunpack.c.l.b16 %v1290
    %v1362 = vunpack.c.l.b16 %v1291
    %v1363 = vunpack.c.l.b16 %v1292
    %v1364 = vunpack.c.l.b16 %v1293
    %v1365 = vunpack.c.l.b16 %v1294
    %v1366 = vpack.c.b16 %v1335, %v1334
    %v1367 = vpack.c.b16 %v1337, %v1336
    %v1368 = vpack.c.b16 %v1339, %v1338
    %v1369 = vpack.c.b16 %v1341, %v1340
    %v1370 = vpack.c.b16 %v1343, %v1342
    %v1371 = vpack.c.b16 %v1345, %v1344
    %v1372 = vpack.c.b16 %v1347, %v1346
    %v1373 = vpack.c.b16 %v1349, %v1348
    %v1374 = vpack.c.b16 %v1351, %v1350
    %v1375 = vpack.c.b16 %v1353, %v1352
    %v1376 = vpack.c.b16 %v1355, %v1354
    %v1377 = vpack.c.b16 %v1357, %v1356
    %v1378 = vpack.c.b16 %v1359, %v1358
    %v1379 = vpack.c.b16 %v1361, %v1360
    %v1380 = vpack.c.b16 %v1363, %v1362
    %v1381 = vpack.c.b16 %v1365, %v1364
    %1398 = vmatprep.subr.bf16.mxu0 0
    %1399 = vmatpush1.bf16.msra.mxu0 %v1366
    %1400 = vmatprep.subr.bf16.mxu0 0
    %1401 = vmatpush1.bf16.msra.mxu0 %v1367
    %1402 = vmatprep.subr.bf16.mxu0 0
    %1403 = vmatpush1.bf16.msra.mxu0 %v1368
    %1404 = vmatprep.subr.bf16.mxu0 0
    %1405 = vmatpush1.bf16.msra.mxu0 %v1369
    %1406 = vmatprep.subr.bf16.mxu0 0
    %1407 = vmatpush1.bf16.msra.mxu0 %v1370
    %1408 = vmatprep.subr.bf16.mxu0 0
    %1409 = vmatpush1.bf16.msra.mxu0 %v1371
    %1410 = vmatprep.subr.bf16.mxu0 0
    %1411 = vmatpush1.bf16.msra.mxu0 %v1372
    %1412 = vmatprep.subr.bf16.mxu0 0
    %1413 = vmatpush1.bf16.msra.mxu0 %v1373
    %1414 = vmatprep.subr.bf16.mxu0 0
    %1415 = vmatpush1.bf16.msra.mxu0 %v1374
    %1416 = vmatprep.subr.bf16.mxu0 0
    %1417 = vmatpush1.bf16.msra.mxu0 %v1375
    %1418 = vmatprep.subr.bf16.mxu0 0
    %1419 = vmatpush1.bf16.msra.mxu0 %v1376
    %1420 = vmatprep.subr.bf16.mxu0 0
    %1421 = vmatpush1.bf16.msra.mxu0 %v1377
    %1422 = vmatprep.subr.bf16.mxu0 0
    %1423 = vmatpush1.bf16.msra.mxu0 %v1378
    %1424 = vmatprep.subr.bf16.mxu0 0
    %1425 = vmatpush1.bf16.msra.mxu0 %v1379
    %1426 = vmatprep.subr.bf16.mxu0 0
    %1427 = vmatpush1.bf16.msra.mxu0 %v1380
    %1428 = vmatprep.subr.bf16.mxu0 0
    %1429 = vmatpush1.bf16.msra.mxu0 %v1381
    %1430 = vmatprep.mubr.bf16.mxu0 %v1262
    %1431 = vmatmul.mubr.bf16.gmra.mrb[0].mxu0 %v1261
    %v1432 = vpop.f32.mrb[0].mxu0
    %v1433 = vadd.f32 %v1300, %v1432
    %v1434 = vpop.f32.mrb[0].mxu0
    %v1435 = vpop.f32.mrb[0].mxu0
    %v1436 = vadd.f32 %v1300, %v1435
    %v1437 = vpop.f32.mrb[0].mxu0
    %1438 = vdwg.mxu0
    %v1439 = vmul.f32 %v1433, 0.2
    %v1440 = vmul.f32 %v1436, 0.2
    %v1441 = vmax.f32 %v1433, %v1439
    %v1442 = vmax.f32 %v1436, %v1440
    %v1443 = vmul.f32 %v1441, %v414
    %v1444 = vmul.f32 %v1442, %v419
    %v1445 = vadd.f32 %v1443, %v1444
    %v1446 = vrot.slane %v1445, 4
    %v1447 = vadd.f32 %v1445, %v1446
    %v1448 = vrot.slane %v1447, 2
    %v1449 = vadd.f32 %v1447, %v1448
    %v1450 = vrot.slane %v1449, 1
    %v1451 = vadd.f32 %v1449, %v1450
    %v1452 = vmul.f32 %v1451, 0.125
    %v1453 = vmul.f32 %v1443, %v1443
    %v1454 = vmul.f32 %v1444, %v1444
    %v1455 = vadd.f32 %v1453, %v1454
    %v1456 = vrot.slane %v1455, 4
    %v1457 = vadd.f32 %v1455, %v1456
    %v1458 = vrot.slane %v1457, 2
    %v1459 = vadd.f32 %v1457, %v1458
    %v1460 = vrot.slane %v1459, 1
    %v1461 = vadd.f32 %v1459, %v1460
    %v1462 = vmul.f32 %v1461, 0.125
    %v1463 = vmul.f32 %v1452, %v1452
    %v1464 = vsub.f32 %v1462, %v1463
    %v1465 = vmax.f32 %v1464, 0.0
    %v1466 = vld [vmem:[%s11] sm:$0x1]
    %v1467 = vadd.f32 %v1465, 1e-05
    %v1468 = vrsqrt.pop %v1467
    %v1469 = vmul.f32 %v1466, %v1468
    %v1470 = vld [vmem:[%s12] sm:$0x1]
    %v1471 = vmul.f32 %v1452, %v1469
    %v1472 = vsub.f32 %v1470, %v1471
    %v1474 = vlaneseq
    %v1475 = vshrl.u32 %v1474, 7
    %v1476 = vsub.s32 0, %v1475
    %v1477 = vrot.slane %v1469, %v1476
    %v1479 = vmul.f32 %v1443, %v1477
    %v1480 = vmul.f32 %v1444, %v1477
    %v1482 = vlaneseq
    %v1483 = vshrl.u32 %v1482, 7
    %v1484 = vsub.s32 0, %v1483
    %v1485 = vrot.slane %v1472, %v1484
    %v1487 = vadd.f32 %v1479, %v1485
    %v1488 = vadd.f32 %v1480, %v1485
    %v1489 = vpack.c.bf16 %v1488, %v1487
    %v1490 = vld [vmem:[#allocation8] sm:$0xff]
    %v1491 = vld [vmem:[#allocation8 + $0x8] sm:$0xff]
    %v1492 = vld [vmem:[#allocation8 + $0x10] sm:$0xff]
    %v1493 = vld [vmem:[#allocation8 + $0x18] sm:$0xf]
    %v1494 = vld [vmem:[#allocation8 + $0x1c] sm:$0xff]
    %v1495 = vld [vmem:[#allocation8 + $0x24] sm:$0xff]
    %v1496 = vld [vmem:[#allocation8 + $0x2c] sm:$0xff]
    %v1497 = vld [vmem:[#allocation8 + $0x34] sm:$0xf]
    %v1498 = vld [vmem:[#allocation8 + $0x38] sm:$0xff]
    %v1499 = vld [vmem:[#allocation8 + $0x40] sm:$0xff]
    %v1500 = vld [vmem:[#allocation8 + $0x48] sm:$0xff]
    %v1501 = vld [vmem:[#allocation8 + $0x50] sm:$0xf]
    %v1502 = vld [vmem:[#allocation8 + $0x54] sm:$0xff]
    %v1503 = vld [vmem:[#allocation8 + $0x5c] sm:$0xff]
    %v1504 = vld [vmem:[#allocation8 + $0x64] sm:$0xff]
    %v1505 = vld [vmem:[#allocation8 + $0x6c] sm:$0xf]
    %v1506 = vld [vmem:[#allocation8 + $0x70] sm:$0xff]
    %v1507 = vld [vmem:[#allocation8 + $0x78] sm:$0xff]
    %v1508 = vld [vmem:[#allocation8 + $0x80] sm:$0xff]
    %v1509 = vld [vmem:[#allocation8 + $0x88] sm:$0xf]
    %v1510 = vld [vmem:[#allocation8 + $0x8c] sm:$0xff]
    %v1511 = vld [vmem:[#allocation8 + $0x94] sm:$0xff]
    %v1512 = vld [vmem:[#allocation8 + $0x9c] sm:$0xff]
    %v1513 = vld [vmem:[#allocation8 + $0xa4] sm:$0xf]
    %v1514 = vld [vmem:[#allocation8 + $0xa8] sm:$0xff]
    %v1515 = vld [vmem:[#allocation8 + $0xb0] sm:$0xff]
    %v1516 = vld [vmem:[#allocation8 + $0xb8] sm:$0xff]
    %v1517 = vld [vmem:[#allocation8 + $0xc0] sm:$0xf]
    %v1518 = vld [vmem:[#allocation8 + $0xc4] sm:$0xff]
    %v1519 = vld [vmem:[#allocation8 + $0xcc] sm:$0xff]
    %v1520 = vld [vmem:[#allocation8 + $0xd4] sm:$0xff]
    %v1521 = vld [vmem:[#allocation8 + $0xdc] sm:$0xf]
    %v1522 = vld [vmem:[#allocation8 + $0xe0] sm:$0xff]
    %v1523 = vld [vmem:[#allocation8 + $0xe8] sm:$0xff]
    %v1524 = vld [vmem:[#allocation8 + $0xf0] sm:$0xff]
    %v1525 = vld [vmem:[#allocation8 + $0xf8] sm:$0xf]
    %v1526 = vld [vmem:[#allocation8 + $0xfc] sm:$0xff]
    %v1527 = vld [vmem:[#allocation8 + $0x104] sm:$0xff]
    %v1528 = vld [vmem:[#allocation8 + $0x10c] sm:$0xff]
    %v1529 = vld [vmem:[#allocation8 + $0x114] sm:$0xf]
    %v1530 = vld [vmem:[#allocation8 + $0x118] sm:$0xff]
    %v1531 = vld [vmem:[#allocation8 + $0x120] sm:$0xff]
    %v1532 = vld [vmem:[#allocation8 + $0x128] sm:$0xff]
    %v1533 = vld [vmem:[#allocation8 + $0x130] sm:$0xf]
    %v1534 = vld [vmem:[#allocation8 + $0x134] sm:$0xff]
    %v1535 = vld [vmem:[#allocation8 + $0x13c] sm:$0xff]
    %v1536 = vld [vmem:[#allocation8 + $0x144] sm:$0xff]
    %v1537 = vld [vmem:[#allocation8 + $0x14c] sm:$0xf]
    %v1538 = vld [vmem:[#allocation8 + $0x150] sm:$0xff]
    %v1539 = vld [vmem:[#allocation8 + $0x158] sm:$0xff]
    %v1540 = vld [vmem:[#allocation8 + $0x160] sm:$0xff]
    %v1541 = vld [vmem:[#allocation8 + $0x168] sm:$0xf]
    %v1542 = vld [vmem:[#allocation8 + $0x16c] sm:$0xff]
    %v1543 = vld [vmem:[#allocation8 + $0x174] sm:$0xff]
    %v1544 = vld [vmem:[#allocation8 + $0x17c] sm:$0xff]
    %v1545 = vld [vmem:[#allocation8 + $0x184] sm:$0xf]
    %v1546 = vld [vmem:[#allocation8 + $0x188] sm:$0xff]
    %v1547 = vld [vmem:[#allocation8 + $0x190] sm:$0xff]
    %v1548 = vld [vmem:[#allocation8 + $0x198] sm:$0xff]
    %v1549 = vld [vmem:[#allocation8 + $0x1a0] sm:$0xf]
    %v1550 = vld [vmem:[#allocation8 + $0x1a4] sm:$0xff]
    %v1551 = vld [vmem:[#allocation8 + $0x1ac] sm:$0xff]
    %v1552 = vld [vmem:[#allocation8 + $0x1b4] sm:$0xff]
    %v1553 = vld [vmem:[#allocation8 + $0x1bc] sm:$0xf]
    %v1554 = vld [vmem:[%s14] sm:$0xff]
    %v1556 = vlaneseq
    %v1557 = vshrl.u32 %v1556, 7
    %v1558 = vsub.s32 0, %v1557
    %v1559 = vrot.slane %v1554, %v1558
    %v1560 = vlaneseq
    %v1561 = vshrl.u32 %v1560, 7
    %v1562 = vsub.s32 1, %v1561
    %v1563 = vrot.slane %v1554, %v1562
    %v1564 = vlaneseq
    %v1565 = vshrl.u32 %v1564, 7
    %v1566 = vsub.s32 2, %v1565
    %v1567 = vrot.slane %v1554, %v1566
    %v1568 = vlaneseq
    %v1569 = vshrl.u32 %v1568, 7
    %v1570 = vsub.s32 3, %v1569
    %v1571 = vrot.slane %v1554, %v1570
    %v1572 = vlaneseq
    %v1573 = vshrl.u32 %v1572, 7
    %v1574 = vsub.s32 4, %v1573
    %v1575 = vrot.slane %v1554, %v1574
    %v1576 = vlaneseq
    %v1577 = vshrl.u32 %v1576, 7
    %v1578 = vsub.s32 5, %v1577
    %v1579 = vrot.slane %v1554, %v1578
    %v1580 = vlaneseq
    %v1581 = vshrl.u32 %v1580, 7
    %v1582 = vsub.s32 6, %v1581
    %v1583 = vrot.slane %v1554, %v1582
    %v1655 = vunpack.c.l.b16 %v1490
    %v1656 = vunpack.c.h.b16 %v1490
    %v1657 = vunpack.c.l.b16 %v1491
    %v1658 = vunpack.c.h.b16 %v1491
    %v1659 = vunpack.c.l.b16 %v1492
    %v1660 = vunpack.c.h.b16 %v1492
    %v1661 = vunpack.c.l.b16 %v1493
    %v1662 = vunpack.c.l.b16 %v1494
    %v1663 = vunpack.c.h.b16 %v1494
    %v1664 = vunpack.c.l.b16 %v1495
    %v1665 = vunpack.c.h.b16 %v1495
    %v1666 = vunpack.c.l.b16 %v1496
    %v1667 = vunpack.c.h.b16 %v1496
    %v1668 = vunpack.c.l.b16 %v1497
    %v1669 = vunpack.c.l.b16 %v1498
    %v1670 = vunpack.c.h.b16 %v1498
    %v1671 = vunpack.c.l.b16 %v1499
    %v1672 = vunpack.c.h.b16 %v1499
    %v1673 = vunpack.c.l.b16 %v1500
    %v1674 = vunpack.c.h.b16 %v1500
    %v1675 = vunpack.c.l.b16 %v1501
    %v1676 = vunpack.c.l.b16 %v1502
    %v1677 = vunpack.c.h.b16 %v1502
    %v1678 = vunpack.c.l.b16 %v1503
    %v1679 = vunpack.c.h.b16 %v1503
    %v1680 = vunpack.c.l.b16 %v1504
    %v1681 = vunpack.c.h.b16 %v1504
    %v1682 = vunpack.c.l.b16 %v1505
    %v1683 = vunpack.c.l.b16 %v1506
    %v1684 = vunpack.c.h.b16 %v1506
    %v1685 = vunpack.c.l.b16 %v1507
    %v1686 = vunpack.c.h.b16 %v1507
    %v1687 = vunpack.c.l.b16 %v1508
    %v1688 = vunpack.c.h.b16 %v1508
    %v1689 = vunpack.c.l.b16 %v1509
    %v1690 = vunpack.c.l.b16 %v1510
    %v1691 = vunpack.c.h.b16 %v1510
    %v1692 = vunpack.c.l.b16 %v1511
    %v1693 = vunpack.c.h.b16 %v1511
    %v1694 = vunpack.c.l.b16 %v1512
    %v1695 = vunpack.c.h.b16 %v1512
    %v1696 = vunpack.c.l.b16 %v1513
    %v1697 = vunpack.c.l.b16 %v1514
    %v1698 = vunpack.c.h.b16 %v1514
    %v1699 = vunpack.c.l.b16 %v1515
    %v1700 = vunpack.c.h.b16 %v1515
    %v1701 = vunpack.c.l.b16 %v1516
    %v1702 = vunpack.c.h.b16 %v1516
    %v1703 = vunpack.c.l.b16 %v1517
    %v1704 = vunpack.c.l.b16 %v1518
    %v1705 = vunpack.c.h.b16 %v1518
    %v1706 = vunpack.c.l.b16 %v1519
    %v1707 = vunpack.c.h.b16 %v1519
    %v1708 = vunpack.c.l.b16 %v1520
    %v1709 = vunpack.c.h.b16 %v1520
    %v1710 = vunpack.c.l.b16 %v1521
    %v1711 = vunpack.c.l.b16 %v1522
    %v1712 = vunpack.c.h.b16 %v1522
    %v1713 = vunpack.c.l.b16 %v1523
    %v1714 = vunpack.c.h.b16 %v1523
    %v1715 = vunpack.c.l.b16 %v1524
    %v1716 = vunpack.c.h.b16 %v1524
    %v1717 = vunpack.c.l.b16 %v1525
    %v1718 = vunpack.c.l.b16 %v1526
    %v1719 = vunpack.c.h.b16 %v1526
    %v1720 = vunpack.c.l.b16 %v1527
    %v1721 = vunpack.c.h.b16 %v1527
    %v1722 = vunpack.c.l.b16 %v1528
    %v1723 = vunpack.c.h.b16 %v1528
    %v1724 = vunpack.c.l.b16 %v1529
    %v1725 = vunpack.c.l.b16 %v1530
    %v1726 = vunpack.c.h.b16 %v1530
    %v1727 = vunpack.c.l.b16 %v1531
    %v1728 = vunpack.c.h.b16 %v1531
    %v1729 = vunpack.c.l.b16 %v1532
    %v1730 = vunpack.c.h.b16 %v1532
    %v1731 = vunpack.c.l.b16 %v1533
    %v1732 = vunpack.c.l.b16 %v1534
    %v1733 = vunpack.c.h.b16 %v1534
    %v1734 = vunpack.c.l.b16 %v1535
    %v1735 = vunpack.c.h.b16 %v1535
    %v1736 = vunpack.c.l.b16 %v1536
    %v1737 = vunpack.c.h.b16 %v1536
    %v1738 = vunpack.c.l.b16 %v1537
    %v1739 = vunpack.c.l.b16 %v1538
    %v1740 = vunpack.c.h.b16 %v1538
    %v1741 = vunpack.c.l.b16 %v1539
    %v1742 = vunpack.c.h.b16 %v1539
    %v1743 = vunpack.c.l.b16 %v1540
    %v1744 = vunpack.c.h.b16 %v1540
    %v1745 = vunpack.c.l.b16 %v1541
    %v1746 = vunpack.c.l.b16 %v1542
    %v1747 = vunpack.c.h.b16 %v1542
    %v1748 = vunpack.c.l.b16 %v1543
    %v1749 = vunpack.c.h.b16 %v1543
    %v1750 = vunpack.c.l.b16 %v1544
    %v1751 = vunpack.c.h.b16 %v1544
    %v1752 = vunpack.c.l.b16 %v1545
    %v1753 = vunpack.c.l.b16 %v1546
    %v1754 = vunpack.c.h.b16 %v1546
    %v1755 = vunpack.c.l.b16 %v1547
    %v1756 = vunpack.c.h.b16 %v1547
    %v1757 = vunpack.c.l.b16 %v1548
    %v1758 = vunpack.c.h.b16 %v1548
    %v1759 = vunpack.c.l.b16 %v1549
    %v1760 = vunpack.c.l.b16 %v1550
    %v1761 = vunpack.c.h.b16 %v1550
    %v1762 = vunpack.c.l.b16 %v1551
    %v1763 = vunpack.c.h.b16 %v1551
    %v1764 = vunpack.c.l.b16 %v1552
    %v1765 = vunpack.c.h.b16 %v1552
    %v1766 = vunpack.c.l.b16 %v1553
    %v1767 = vpack.c.b16 %v1662, %v1655
    %v1768 = vpack.c.b16 %v1663, %v1656
    %v1769 = vpack.c.b16 %v1664, %v1657
    %v1770 = vpack.c.b16 %v1665, %v1658
    %v1771 = vpack.c.b16 %v1666, %v1659
    %v1772 = vpack.c.b16 %v1667, %v1660
    %v1773 = vpack.c.b16 %v1668, %v1661
    %v1774 = vpack.c.b16 %v1676, %v1669
    %v1775 = vpack.c.b16 %v1677, %v1670
    %v1776 = vpack.c.b16 %v1678, %v1671
    %v1777 = vpack.c.b16 %v1679, %v1672
    %v1778 = vpack.c.b16 %v1680, %v1673
    %v1779 = vpack.c.b16 %v1681, %v1674
    %v1780 = vpack.c.b16 %v1682, %v1675
    %v1781 = vpack.c.b16 %v1690, %v1683
    %v1782 = vpack.c.b16 %v1691, %v1684
    %v1783 = vpack.c.b16 %v1692, %v1685
    %v1784 = vpack.c.b16 %v1693, %v1686
    %v1785 = vpack.c.b16 %v1694, %v1687
    %v1786 = vpack.c.b16 %v1695, %v1688
    %v1787 = vpack.c.b16 %v1696, %v1689
    %v1788 = vpack.c.b16 %v1704, %v1697
    %v1789 = vpack.c.b16 %v1705, %v1698
    %v1790 = vpack.c.b16 %v1706, %v1699
    %v1791 = vpack.c.b16 %v1707, %v1700
    %v1792 = vpack.c.b16 %v1708, %v1701
    %v1793 = vpack.c.b16 %v1709, %v1702
    %v1794 = vpack.c.b16 %v1710, %v1703
    %v1795 = vpack.c.b16 %v1718, %v1711
    %v1796 = vpack.c.b16 %v1719, %v1712
    %v1797 = vpack.c.b16 %v1720, %v1713
    %v1798 = vpack.c.b16 %v1721, %v1714
    %v1799 = vpack.c.b16 %v1722, %v1715
    %v1800 = vpack.c.b16 %v1723, %v1716
    %v1801 = vpack.c.b16 %v1724, %v1717
    %v1802 = vpack.c.b16 %v1732, %v1725
    %v1803 = vpack.c.b16 %v1733, %v1726
    %v1804 = vpack.c.b16 %v1734, %v1727
    %v1805 = vpack.c.b16 %v1735, %v1728
    %v1806 = vpack.c.b16 %v1736, %v1729
    %v1807 = vpack.c.b16 %v1737, %v1730
    %v1808 = vpack.c.b16 %v1738, %v1731
    %v1809 = vpack.c.b16 %v1746, %v1739
    %v1810 = vpack.c.b16 %v1747, %v1740
    %v1811 = vpack.c.b16 %v1748, %v1741
    %v1812 = vpack.c.b16 %v1749, %v1742
    %v1813 = vpack.c.b16 %v1750, %v1743
    %v1814 = vpack.c.b16 %v1751, %v1744
    %v1815 = vpack.c.b16 %v1752, %v1745
    %v1816 = vpack.c.b16 %v1760, %v1753
    %v1817 = vpack.c.b16 %v1761, %v1754
    %v1818 = vpack.c.b16 %v1762, %v1755
    %v1819 = vpack.c.b16 %v1763, %v1756
    %v1820 = vpack.c.b16 %v1764, %v1757
    %v1821 = vpack.c.b16 %v1765, %v1758
    %v1822 = vpack.c.b16 %v1766, %v1759
    %1879 = vmatprep.subr.bf16.mxu0 %v1768
    %1880 = vmatpush1.bf16.msra.mxu0 %v1767
    %1881 = vmatprep.subr.bf16.mxu0 %v1775
    %1882 = vmatpush1.bf16.msra.mxu0 %v1774
    %1883 = vmatprep.subr.bf16.mxu0 %v1782
    %1884 = vmatpush1.bf16.msra.mxu0 %v1781
    %1885 = vmatprep.subr.bf16.mxu0 %v1789
    %1886 = vmatpush1.bf16.msra.mxu0 %v1788
    %1887 = vmatprep.subr.bf16.mxu0 %v1796
    %1888 = vmatpush1.bf16.msra.mxu0 %v1795
    %1889 = vmatprep.subr.bf16.mxu0 %v1803
    %1890 = vmatpush1.bf16.msra.mxu0 %v1802
    %1891 = vmatprep.subr.bf16.mxu0 %v1810
    %1892 = vmatpush1.bf16.msra.mxu0 %v1809
    %1893 = vmatprep.subr.bf16.mxu0 %v1817
    %1894 = vmatpush1.bf16.msra.mxu0 %v1816
    %1895 = vmatprep.subr.bf16.mxu0 0
    %1896 = vmatpush1.bf16.msra.mxu0 0
    %1897 = vmatprep.subr.bf16.mxu0 0
    %1898 = vmatpush1.bf16.msra.mxu0 0
    %1899 = vmatprep.subr.bf16.mxu0 0
    %1900 = vmatpush1.bf16.msra.mxu0 0
    %1901 = vmatprep.subr.bf16.mxu0 0
    %1902 = vmatpush1.bf16.msra.mxu0 0
    %1903 = vmatprep.subr.bf16.mxu0 0
    %1904 = vmatpush1.bf16.msra.mxu0 0
    %1905 = vmatprep.subr.bf16.mxu0 0
    %1906 = vmatpush1.bf16.msra.mxu0 0
    %1907 = vmatprep.subr.bf16.mxu0 0
    %1908 = vmatpush1.bf16.msra.mxu0 0
    %1909 = vmatprep.subr.bf16.mxu0 0
    %1910 = vmatpush1.bf16.msra.mxu0 0
    %1911 = vmatprep.mubr.bf16.mxu0 0
    %1912 = vmatmul.mubr.bf16.gmra.mrb[0].mxu0 %v1489
    %v1913 = vpop.f32.mrb[0].mxu0
    %v1914 = vadd.f32 %v1559, %v1913
    %v1915 = vpop.f32.mrb[0].mxu0
    %v1916 = vadd.f32 %v1563, %v1915
    %v1917 = vpop.f32.mrb[0].mxu0
    %v1918 = vadd.f32 %v1559, %v1917
    %v1919 = vpop.f32.mrb[0].mxu0
    %v1920 = vadd.f32 %v1563, %v1919
    %1921 = vdwg.mxu0
    %1922 = vmatprep.subr.bf16.mxu0 %v1770
    %1923 = vmatpush1.bf16.msra.mxu0 %v1769
    %1924 = vmatprep.subr.bf16.mxu0 %v1777
    %1925 = vmatpush1.bf16.msra.mxu0 %v1776
    %1926 = vmatprep.subr.bf16.mxu0 %v1784
    %1927 = vmatpush1.bf16.msra.mxu0 %v1783
    %1928 = vmatprep.subr.bf16.mxu0 %v1791
    %1929 = vmatpush1.bf16.msra.mxu0 %v1790
    %1930 = vmatprep.subr.bf16.mxu0 %v1798
    %1931 = vmatpush1.bf16.msra.mxu0 %v1797
    %1932 = vmatprep.subr.bf16.mxu0 %v1805
    %1933 = vmatpush1.bf16.msra.mxu0 %v1804
    %1934 = vmatprep.subr.bf16.mxu0 %v1812
    %1935 = vmatpush1.bf16.msra.mxu0 %v1811
    %1936 = vmatprep.subr.bf16.mxu0 %v1819
    %1937 = vmatpush1.bf16.msra.mxu0 %v1818
    %1938 = vmatprep.subr.bf16.mxu0 0
    %1939 = vmatpush1.bf16.msra.mxu0 0
    %1940 = vmatprep.subr.bf16.mxu0 0
    %1941 = vmatpush1.bf16.msra.mxu0 0
    %1942 = vmatprep.subr.bf16.mxu0 0
    %1943 = vmatpush1.bf16.msra.mxu0 0
    %1944 = vmatprep.subr.bf16.mxu0 0
    %1945 = vmatpush1.bf16.msra.mxu0 0
    %1946 = vmatprep.subr.bf16.mxu0 0
    %1947 = vmatpush1.bf16.msra.mxu0 0
    %1948 = vmatprep.subr.bf16.mxu0 0
    %1949 = vmatpush1.bf16.msra.mxu0 0
    %1950 = vmatprep.subr.bf16.mxu0 0
    %1951 = vmatpush1.bf16.msra.mxu0 0
    %1952 = vmatprep.subr.bf16.mxu0 0
    %1953 = vmatpush1.bf16.msra.mxu0 0
    %1954 = vmatprep.mubr.bf16.mxu0 0
    %1955 = vmatmul.mubr.bf16.gmra.mrb[0].mxu0 %v1489
    %v1956 = vpop.f32.mrb[0].mxu0
    %v1957 = vadd.f32 %v1567, %v1956
    %v1958 = vpop.f32.mrb[0].mxu0
    %v1959 = vadd.f32 %v1571, %v1958
    %v1960 = vpop.f32.mrb[0].mxu0
    %v1961 = vadd.f32 %v1567, %v1960
    %v1962 = vpop.f32.mrb[0].mxu0
    %v1963 = vadd.f32 %v1571, %v1962
    %1964 = vdwg.mxu0
    %1965 = vmatprep.subr.bf16.mxu0 %v1772
    %1966 = vmatpush1.bf16.msra.mxu0 %v1771
    %1967 = vmatprep.subr.bf16.mxu0 %v1779
    %1968 = vmatpush1.bf16.msra.mxu0 %v1778
    %1969 = vmatprep.subr.bf16.mxu0 %v1786
    %1970 = vmatpush1.bf16.msra.mxu0 %v1785
    %1971 = vmatprep.subr.bf16.mxu0 %v1793
    %1972 = vmatpush1.bf16.msra.mxu0 %v1792
    %1973 = vmatprep.subr.bf16.mxu0 %v1800
    %1974 = vmatpush1.bf16.msra.mxu0 %v1799
    %1975 = vmatprep.subr.bf16.mxu0 %v1807
    %1976 = vmatpush1.bf16.msra.mxu0 %v1806
    %1977 = vmatprep.subr.bf16.mxu0 %v1814
    %1978 = vmatpush1.bf16.msra.mxu0 %v1813
    %1979 = vmatprep.subr.bf16.mxu0 %v1821
    %1980 = vmatpush1.bf16.msra.mxu0 %v1820
    %1981 = vmatprep.subr.bf16.mxu0 0
    %1982 = vmatpush1.bf16.msra.mxu0 0
    %1983 = vmatprep.subr.bf16.mxu0 0
    %1984 = vmatpush1.bf16.msra.mxu0 0
    %1985 = vmatprep.subr.bf16.mxu0 0
    %1986 = vmatpush1.bf16.msra.mxu0 0
    %1987 = vmatprep.subr.bf16.mxu0 0
    %1988 = vmatpush1.bf16.msra.mxu0 0
    %1989 = vmatprep.subr.bf16.mxu0 0
    %1990 = vmatpush1.bf16.msra.mxu0 0
    %1991 = vmatprep.subr.bf16.mxu0 0
    %1992 = vmatpush1.bf16.msra.mxu0 0
    %1993 = vmatprep.subr.bf16.mxu0 0
    %1994 = vmatpush1.bf16.msra.mxu0 0
    %1995 = vmatprep.subr.bf16.mxu0 0
    %1996 = vmatpush1.bf16.msra.mxu0 0
    %1997 = vmatprep.mubr.bf16.mxu0 0
    %1998 = vmatmul.mubr.bf16.gmra.mrb[0].mxu0 %v1489
    %v1999 = vpop.f32.mrb[0].mxu0
    %v2000 = vadd.f32 %v1575, %v1999
    %v2001 = vpop.f32.mrb[0].mxu0
    %v2002 = vadd.f32 %v1579, %v2001
    %v2003 = vpop.f32.mrb[0].mxu0
    %v2004 = vadd.f32 %v1575, %v2003
    %v2005 = vpop.f32.mrb[0].mxu0
    %v2006 = vadd.f32 %v1579, %v2005
    %2007 = vdwg.mxu0
    %2008 = vmatprep.subr.bf16.mxu0 0
    %2009 = vmatpush1.bf16.msra.mxu0 %v1773
    %2010 = vmatprep.subr.bf16.mxu0 0
    %2011 = vmatpush1.bf16.msra.mxu0 %v1780
    %2012 = vmatprep.subr.bf16.mxu0 0
    %2013 = vmatpush1.bf16.msra.mxu0 %v1787
    %2014 = vmatprep.subr.bf16.mxu0 0
    %2015 = vmatpush1.bf16.msra.mxu0 %v1794
    %2016 = vmatprep.subr.bf16.mxu0 0
    %2017 = vmatpush1.bf16.msra.mxu0 %v1801
    %2018 = vmatprep.subr.bf16.mxu0 0
    %2019 = vmatpush1.bf16.msra.mxu0 %v1808
    %2020 = vmatprep.subr.bf16.mxu0 0
    %2021 = vmatpush1.bf16.msra.mxu0 %v1815
    %2022 = vmatprep.subr.bf16.mxu0 0
    %2023 = vmatpush1.bf16.msra.mxu0 %v1822
    %2024 = vmatprep.subr.bf16.mxu0 0
    %2025 = vmatpush1.bf16.msra.mxu0 0
    %2026 = vmatprep.subr.bf16.mxu0 0
    %2027 = vmatpush1.bf16.msra.mxu0 0
    %2028 = vmatprep.subr.bf16.mxu0 0
    %2029 = vmatpush1.bf16.msra.mxu0 0
    %2030 = vmatprep.subr.bf16.mxu0 0
    %2031 = vmatpush1.bf16.msra.mxu0 0
    %2032 = vmatprep.subr.bf16.mxu0 0
    %2033 = vmatpush1.bf16.msra.mxu0 0
    %2034 = vmatprep.subr.bf16.mxu0 0
    %2035 = vmatpush1.bf16.msra.mxu0 0
    %2036 = vmatprep.subr.bf16.mxu0 0
    %2037 = vmatpush1.bf16.msra.mxu0 0
    %2038 = vmatprep.subr.bf16.mxu0 0
    %2039 = vmatpush1.bf16.msra.mxu0 0
    %2040 = vmatprep.mubr.bf16.mxu0 0
    %2041 = vmatmul.mubr.bf16.gmra.mrb[0].mxu0 %v1489
    %v2042 = vpop.f32.mrb[0].mxu0
    %v2043 = vadd.f32 %v1583, %v2042
    %v2044 = vpop.f32.mrb[0].mxu0
    %v2045 = vpop.f32.mrb[0].mxu0
    %v2046 = vadd.f32 %v1583, %v2045
    %v2047 = vpop.f32.mrb[0].mxu0
    %2048 = vdwg.mxu0
    %2049 = vst [vmem:[#allocation10] sm:$0xff] %v1914
    %2050 = vst [vmem:[#allocation10 + $0x8] sm:$0xff] %v1916
    %2051 = vst [vmem:[#allocation10 + $0x10] sm:$0xff] %v1957
    %2052 = vst [vmem:[#allocation10 + $0x18] sm:$0xff] %v1959
    %2053 = vst [vmem:[#allocation10 + $0x20] sm:$0xff] %v2000
    %2054 = vst [vmem:[#allocation10 + $0x28] sm:$0xff] %v2002
    %2055 = vst [vmem:[#allocation10 + $0x30] sm:$0xff] %v2043
    %2056 = vst [vmem:[#allocation10 + $0x38] sm:$0xff] %v1918
    %2057 = vst [vmem:[#allocation10 + $0x40] sm:$0xff] %v1920
    %2058 = vst [vmem:[#allocation10 + $0x48] sm:$0xff] %v1961
    %2059 = vst [vmem:[#allocation10 + $0x50] sm:$0xff] %v1963
    %2060 = vst [vmem:[#allocation10 + $0x58] sm:$0xff] %v2004
    %2061 = vst [vmem:[#allocation10 + $0x60] sm:$0xff] %v2006
    %2062 = vst [vmem:[#allocation10 + $0x68] sm:$0xff] %v2046
    // Predicated region
    $region78: #{tpu_custom_call.1} parent=1 // pred_check
      _
    $region79: #{tpu_custom_call.1} parent=1 // pred_check_branch
      %2064 = sbr.rel (0) target = $region81
    $region80: #{tpu_custom_call.1} parent=1 // pred_region
      %s2066 = ssub.s32 1792, 1792
      %2067 = vsyncadd [#allocation4], %s2066
      %s2068 = sshll.u32 [#allocation10], 4
      %s2069 = int_to_ptr.vmem [resolvable:$true] %s2068
      %2074 = dma.vmem_to_hbm [thread:$0]  %s2069, 1792, %s15, [#allocation4], 896, 896, 56
    $region81: #{tpu_custom_call.1} parent=1 // pred_fallthru
      _
    // Predicated region
    $region82: #{tpu_custom_call.1} parent=1 // pred_check
      _
    $region83: #{tpu_custom_call.1} parent=1 // pred_check_branch
      %2076 = sbr.rel (0) target = $region85
    $region84: #{tpu_custom_call.1} parent=1 // pred_region
      %2077 = dma.done [#allocation4], 1792
    $region85: #{tpu_custom_call.1} parent=1 // pred_fallthru
      _
    %2078 = vsyncpa [#allocation3], 1
    %2079 = vsyncpa [#allocation6], 1
    %2080 = vsyncpa [#allocation9], 1
    %2081 = vsyncpa [#allocation4], 1

</llo_original>
